<compile_context>
chip_gen: v6e
topology: v6e:2x2x1
jax: 0.10.0
libtpu: 0.0.40
codegen_flags: <defaults>
</compile_context>

<pallas_src>
import jax
import jax.numpy as jnp
from jax.experimental import pallas as pl
from jax.experimental.pallas import tpu as pltpu


_VMEM_BUDGET_BYTES = 26 * 1024 * 1024   # double-buffered x + out blocks budget
_VMEM_LIMIT_BYTES = 32 * 1024 * 1024    # explicit scoped-VMEM limit (ok on v5e/v6e/v7x)
_MIN_TILE_ROWS = 512                    # never shrink blocks below this for grid-splitting
_TARGET_GRID = 4                        # aim for >= 4 steps so both TCs get work (v7x)
_XLA_FALLBACK_ROWS = 128                # tiny batches: plain XLA is faster


def _round_up(a, b):
    return ((a + b - 1) // b) * b


def density_block_kernel(x_ref, w_ref, b_ref, out_ref):
    # (tile, ind) @ (ind, 2) -> (tile, 2); f32 accumulation on the MXU.
    out = jnp.dot(x_ref[...], w_ref[...], preferred_element_type=jnp.float32)
    out = out + b_ref[...]                              # (1, 2) broadcast over rows
    # Column 0 -> mean (identity); column 1 -> sigma = exp(.).
    # exp() goes to the EUP (its own issue slot); the select keeps column 0
    # untouched. OOB rows of a boundary block may produce inf/NaN here — they
    # are dropped by the masked writeback of the partial output block.
    col = jax.lax.broadcasted_iota(jnp.int32, out.shape, 1)
    out_ref[...] = jnp.where(col == 0, out, jnp.exp(out))


def _choose_tile(n, ind, x_itemsize):
    """Rows per grid step, sized by VMEM bytes (incl. lane padding), not rows."""
    lanes = _round_up(max(ind, 1), 128)
    # Per-row VMEM cost of one pipeline stage: double-buffered x block
    # (lane-padded) + double-buffered (tile, 2)->(tile, 128-lane) f32 out block.
    bytes_per_row = 2 * (lanes * x_itemsize + 128 * 4)
    tile = (_VMEM_BUDGET_BYTES // bytes_per_row) // 8 * 8
    tile = max(tile, 8)
    # Keep >= _TARGET_GRID grid steps for megacore / v7x TC sharding, but never
    # shrink below _MIN_TILE_ROWS (per-step overhead would dominate again).
    per_step = _round_up(pl.cdiv(n, _TARGET_GRID), 8)
    tile = min(tile, max(_MIN_TILE_ROWS, per_step))
    # No point making the block larger than (rounded-up) n.
    tile = min(tile, _round_up(n, 8))
    return tile


def new_density_block(x, weight, bias=None):
    """Pallas implementation of New_Density_Block.forward.

    x:      (N, ind) float32 or bfloat16
    weight: (ind, 2)
    bias:   (2,) or None (isbias=0)
    returns (mean, sigma), each (N, 1) float32
    """
    n, ind = x.shape
    assert weight.shape == (ind, 2)

    # Keep the caller's dtype for x (bf16 halves the dominant HBM read);
    # never add a wrapper-side cast pass over x.
    if x.dtype not in (jnp.bfloat16, jnp.float32):
        x = x.astype(jnp.float32)
    w_dtype = jnp.bfloat16 if x.dtype == jnp.bfloat16 else jnp.float32
    w = weight.astype(w_dtype)
    if bias is None:
        b2d = jnp.zeros((1, 2), jnp.float32)            # isbias=0 path
    else:
        b2d = bias.reshape(1, 2).astype(jnp.float32)

    if n < _XLA_FALLBACK_ROWS:
        # Tiny batch: fixed pallas_call / grid-step overhead dominates.
        out = jnp.dot(x, w, preferred_element_type=jnp.float32) + b2d
        return out[:, 0:1], jnp.exp(out[:, 1:2])

    tile = _choose_tile(n, ind, jnp.dtype(x.dtype).itemsize)
    grid = (pl.cdiv(n, tile),)   # boundary block masked by Pallas; no jnp.pad copy

    out = pl.pallas_call(
        density_block_kernel,
        out_shape=jax.ShapeDtypeStruct((n, 2), jnp.float32),
        grid=grid,
        in_specs=[
            pl.BlockSpec((tile, ind), lambda i: (i, 0)),   # x: tiled over rows
            pl.BlockSpec((ind, 2), lambda i: (0, 0)),      # weight: resident
            pl.BlockSpec((1, 2), lambda i: (0, 0)),        # bias: resident
        ],
        out_specs=pl.BlockSpec((tile, 2), lambda i: (i, 0)),
        compiler_params=pltpu.CompilerParams(
            dimension_semantics=("parallel",),
            vmem_limit_bytes=_VMEM_LIMIT_BYTES,
        ),
        cost_estimate=pl.CostEstimate(
            flops=4 * n * ind,
            transcendentals=2 * n,
            bytes_accessed=(n * ind * jnp.dtype(x.dtype).itemsize
                            + n * 2 * 4 + ind * 2 * 4 + 8),
        ),
    )(x, w, b2d)

    mean = out[:, 0:1]
    sigma = out[:, 1:2]
    return mean, sigma


def reference(x, weight, bias):
    out = jnp.dot(x.astype(jnp.float32), weight.astype(jnp.float32),
                  precision=jax.lax.Precision.HIGHEST)
    if bias is not None:
        out = out + bias.astype(jnp.float32)
    return out[:, 0:1], jnp.exp(out[:, 1:2])


def _check(n, ind, key):
    k_x, k_w, k_b = jax.random.split(key, 3)
    x = jax.random.uniform(k_x, (n, ind), dtype=jnp.float32)
    weight = jax.random.uniform(k_w, (ind, 2), dtype=jnp.float32)
    bias = jax.random.uniform(k_b, (2,), dtype=jnp.float32)

    mean, sigma = new_density_block(x, weight, bias)
    jax.block_until_ready((mean, sigma))

    mean_ref, sigma_ref = reference(x, weight, bias)
    assert mean.shape == (n, 1) and sigma.shape == (n, 1)
    # mean compared directly; sigma compared in log-space so exp() does not
    # amplify benign matmul-precision differences.
    assert jnp.allclose(mean, mean_ref, atol=3e-2, rtol=1e-2), "mean mismatch"
    assert jnp.allclose(jnp.log(sigma), jnp.log(sigma_ref),
                        atol=3e-2, rtol=1e-2), "sigma mismatch"


if __name__ == "__main__":
    key = jax.random.PRNGKey(0)
    k0, k1, k2, k3 = jax.random.split(key, 4)

    # Tiny batch consistent with the module: XLA fallback path.
    _check(8, 32, k0)
    # Kernel path, 2 grid steps (megacore-shardable), boundary-masked tail.
    _check(640, 32, k1)
    # Kernel path, 4 grid steps, ragged N (not a multiple of 8 or 128).
    _check(1999, 32, k2)
    # Kernel path with an unaligned feature dim (full-dim last-axis block).
    _check(640, 100, k3)

    print("KERNEL_OK")
</pallas_src>

<mosaic_0001>
module attributes {stable_mosaic.version = 11 : i64} {
  func.func @density_block_kernel(%arg0: i32, %arg1: memref<512x32xf32, #tpu.memory_space<vmem>>, %arg2: memref<32x2xf32, #tpu.memory_space<vmem>>, %arg3: memref<1x2xf32, #tpu.memory_space<vmem>>, %arg4: memref<512x2xf32, #tpu.memory_space<vmem>>) attributes {dimension_semantics = [#tpu.dimension_semantics<parallel>], iteration_bounds = array<i64: 2>, scalar_prefetch = 0 : i64, scratch_operands = 0 : i64, tpu.core_type = #tpu.core_type<tc>, window_params = [{transform_indices = @transform_0, window_bounds = array<i64: 512, 32>}, {pipeline_mode = #tpu.pipeline_mode<synchronous>, transform_indices = @transform_1, window_bounds = array<i64: 32, 2>}, {pipeline_mode = #tpu.pipeline_mode<synchronous>, transform_indices = @transform_2, window_bounds = array<i64: 1, 2>}, {transform_indices = @transform_3, window_bounds = array<i64: 512, 2>}]} {
    %c0 = arith.constant 0 : index
    %c0_0 = arith.constant 0 : index
    %0 = vector.load %arg1[%c0, %c0_0] : memref<512x32xf32, #tpu.memory_space<vmem>>, vector<512x32xf32>
    %c0_1 = arith.constant 0 : index
    %c0_2 = arith.constant 0 : index
    %1 = vector.load %arg2[%c0_1, %c0_2] : memref<32x2xf32, #tpu.memory_space<vmem>>, vector<32x2xf32>
    %cst = arith.constant dense<0.000000e+00> : vector<512x2xf32>
    %2 = tpu.matmul %0, %1, %cst {dimension_numbers = #tpu.dot_dimension_numbers<[1], [0], [0], [1], [0, 0, 1, 1], [], []>} : vector<512x32xf32>, vector<32x2xf32>, vector<512x2xf32> -> vector<512x2xf32>
    %c0_3 = arith.constant 0 : index
    %c0_4 = arith.constant 0 : index
    %3 = vector.load %arg3[%c0_3, %c0_4] : memref<1x2xf32, #tpu.memory_space<vmem>>, vector<1x2xf32>
    %4 = vector.broadcast %3 : vector<1x2xf32> to vector<512x2xf32>
    %5 = arith.addf %2, %4 : vector<512x2xf32>
    %6 = tpu.iota {dimensions = array<i32: 1>} : vector<512x2xi32>
    %c0_i32 = arith.constant 0 : i32
    %7 = vector.broadcast %c0_i32 : i32 to vector<512x2xi32>
    %8 = arith.cmpi eq, %6, %7 : vector<512x2xi32>
    %9 = math.exp %5 : vector<512x2xf32>
    %10 = arith.select %8, %5, %9 : vector<512x2xi1>, vector<512x2xf32>
    %c0_5 = arith.constant 0 : index
    %c0_6 = arith.constant 0 : index
    %11 = vector.load %arg4[%c0_5, %c0_6] : memref<512x2xf32, #tpu.memory_space<vmem>>, vector<512x2xf32>
    tpu.vector_store %arg4[%c0_5, %c0_6], %10 {strides = array<i32>} : memref<512x2xf32, #tpu.memory_space<vmem>>, vector<512x2xf32>,
    return
  }
  func.func @transform_0(%arg0: i32) -> (i32, i32) {
    %c0_i32 = arith.constant 0 : i32
    %c0_i32_0 = arith.constant 0 : i32
    return %arg0, %c0_i32 : i32, i32
  }
  func.func @transform_1(%arg0: i32) -> (i32, i32) {
    %c0_i32 = arith.constant 0 : i32
    %c0_i32_0 = arith.constant 0 : i32
    %c0_i32_1 = arith.constant 0 : i32
    return %c0_i32, %c0_i32_0 : i32, i32
  }
  func.func @transform_2(%arg0: i32) -> (i32, i32) {
    %c0_i32 = arith.constant 0 : i32
    %c0_i32_0 = arith.constant 0 : i32
    %c0_i32_1 = arith.constant 0 : i32
    return %c0_i32, %c0_i32_0 : i32, i32
  }
  func.func @transform_3(%arg0: i32) -> (i32, i32) {
    %c0_i32 = arith.constant 0 : i32
    %c0_i32_0 = arith.constant 0 : i32
    return %arg0, %c0_i32 : i32, i32
  }
}

</mosaic_0001>

<llo_original>
// kernel: tpu_custom_call.1
$region0: #{tpu_custom_call.1}
  #allocation0 [shape = 'u32[]', space=smem, size = 0x4, offset = 0x4, fixed_abs, tag = 'smem constant byte address 0x4 - core index']
  #allocation1 [shape = 'u32[144,128]{1,0:T(1,128)}', space=vmem, size = 0x12000, scoped, tag = 'internal scratch']
  %s0 = inlined_call_operand.vmem [shape: f32[640,32], index: 0, kind: input, shape index: {}]
  %s1 = inlined_call_operand.vmem [shape: f32[32,2], index: 1, kind: input, shape index: {}]
  %s2 = inlined_call_operand.vmem [shape: f32[1,2], index: 2, kind: input, shape index: {}]
  %s3 = inlined_call_operand.vmem [shape: f32[640,2], index: 3, kind: output, shape index: {}]
  %s4 = sld [smem:[#allocation0]]
  $region93: #{tpu_custom_call.1} parent=0
    _
  %s6 = ssub.s32 1, %s4
  %s7 = scalar_select 0, %s6, %s4
  $region1: #{tpu_custom_call.1} parent=0
    #allocation2 [shape = 'u8[524288]{0}', space=vmem, size = 0x80000, scoped, tag = 'output window, operand 0']
    loop: start=0, step=1, limit=4
    $region2: #{tpu_custom_call.1} parent=1 // loop_pre_header
      _
    $region3: #{tpu_custom_call.1} parent=1 // loop_header
      %s9 = sphi 0, %s13
      %p10 = scmp.ge.s32.totalorder %s9, 4
      %s19 = sphi 0, %s21
      %s22 = sphi 0, %s19
      %s23 = sphi 0, %s22
      %s39 = sphi 0, %s23
      %s43 = sphi 0, %s43
      %s45 = sphi 0, %s43
      %s46 = sphi 0, %s45
      %s60 = sphi 0, %s46
      %s64 = sphi 0, %s64
      %s66 = sphi 0, %s64
      %s67 = sphi 0, %s66
      %s81 = sphi 0, %s67
      %s87 = sphi 0, %s89
      %s90 = sphi 0, %s87
      %s91 = sphi 0, %s90
      %s107 = sphi 0, %s91
    $region4: #{tpu_custom_call.1} parent=1 // loop_header_branch
      %12 = sbr.rel (%p10) target = $region8
    $region5: #{tpu_custom_call.1} parent=1 // loop_body
      %s14 = ssub.s32 %s9, 1
      %s15 = ssub.s32 %s9, 2
      %s16 = sadd.s32 %s9, 1
      %s17 = ssub.s32 %s9, %s16
      %p18 = scmp.eq.s32.totalorder %s17, 0
      %s20 = sadd.s32 %s19, 1
      %s21 = scalar_select %p18, %s19, %s20
      %p24 = pneg %p18
      %p25 = scmp.eq.s32.totalorder %s9, 1
      %p26 = por %p24, %p25
      %p27 = scmp.ne.s32.totalorder %s19, %s22
      %p28 = scmp.eq.s32.totalorder %s9, 0
      %p29 = por %p27, %p28
      %p30 = scmp.ne.s32.totalorder %s19, %s22
      %p31 = scmp.eq.s32.totalorder %s14, 1
      %p32 = por %p30, %p31
      %p33 = scmp.ne.s32.totalorder %s22, %s23
      %p34 = scmp.eq.s32.totalorder %s14, 0
      %p35 = por %p33, %p34
      %p36 = scmp.ne.s32.totalorder %s22, %s23
      %p37 = scmp.eq.s32.totalorder %s15, 1
      %p38 = por %p36, %p37
      %p40 = scmp.ne.s32.totalorder %s23, %s39
      %p41 = scmp.eq.s32.totalorder %s15, 0
      %p42 = por %p40, %p41
      %s44 = sadd.s32 %s43, 1
      %p47 = scmp.eq.s32.totalorder %s9, 1
      %p48 = scmp.ne.s32.totalorder %s43, %s45
      %p49 = scmp.eq.s32.totalorder %s9, 0
      %p50 = por %p48, %p49
      %p51 = scmp.ne.s32.totalorder %s43, %s45
      %p52 = scmp.eq.s32.totalorder %s14, 1
      %p53 = por %p51, %p52
      %p54 = scmp.ne.s32.totalorder %s45, %s46
      %p55 = scmp.eq.s32.totalorder %s14, 0
      %p56 = por %p54, %p55
      %p57 = scmp.ne.s32.totalorder %s45, %s46
      %p58 = scmp.eq.s32.totalorder %s15, 1
      %p59 = por %p57, %p58
      %p61 = scmp.ne.s32.totalorder %s46, %s60
      %p62 = scmp.eq.s32.totalorder %s15, 0
      %p63 = por %p61, %p62
      %s65 = sadd.s32 %s64, 1
      %p68 = scmp.eq.s32.totalorder %s9, 1
      %p69 = scmp.ne.s32.totalorder %s64, %s66
      %p70 = scmp.eq.s32.totalorder %s9, 0
      %p71 = por %p69, %p70
      %p72 = scmp.ne.s32.totalorder %s64, %s66
      %p73 = scmp.eq.s32.totalorder %s14, 1
      %p74 = por %p72, %p73
      %p75 = scmp.ne.s32.totalorder %s66, %s67
      %p76 = scmp.eq.s32.totalorder %s14, 0
      %p77 = por %p75, %p76
      %p78 = scmp.ne.s32.totalorder %s66, %s67
      %p79 = scmp.eq.s32.totalorder %s15, 1
      %p80 = por %p78, %p79
      %p82 = scmp.ne.s32.totalorder %s67, %s81
      %p83 = scmp.eq.s32.totalorder %s15, 0
      %p84 = por %p82, %p83
      %s85 = ssub.s32 %s9, %s16
      %p86 = scmp.eq.s32.totalorder %s85, 0
      %s88 = sadd.s32 %s87, 1
      %s89 = scalar_select %p86, %s87, %s88
      %p92 = pneg %p86
      %p93 = scmp.eq.s32.totalorder %s9, 1
      %p94 = por %p92, %p93
      %p95 = scmp.ne.s32.totalorder %s87, %s90
      %p96 = scmp.eq.s32.totalorder %s9, 0
      %p97 = por %p95, %p96
      %p98 = scmp.ne.s32.totalorder %s87, %s90
      %p99 = scmp.eq.s32.totalorder %s14, 1
      %p100 = por %p98, %p99
      %p101 = scmp.ne.s32.totalorder %s90, %s91
      %p102 = scmp.eq.s32.totalorder %s14, 0
      %p103 = por %p101, %p102
      %p104 = scmp.ne.s32.totalorder %s90, %s91
      %p105 = scmp.eq.s32.totalorder %s15, 1
      %p106 = por %p104, %p105
      %p108 = scmp.ne.s32.totalorder %s91, %s107
      %p109 = scmp.eq.s32.totalorder %s15, 0
      %p110 = por %p108, %p109
      %p111 = scmp.le.s32.totalorder 1, %s9
      %p112 = scmp.lt.s32.totalorder %s9, 3
      %p113 = pnand %p111, %p112
      %p114 = pneg %p113
      // Predicated region
      $region9: #{tpu_custom_call.1} parent=5 // pred_check
        _
      $region10: #{tpu_custom_call.1} parent=5 // pred_check_branch
        %116 = sbr.rel (%p113) target = $region12
      $region11: #{tpu_custom_call.1} parent=5 // pred_region
        %s117 = ssub.s32 %s9, 1
        // Predicated region
        $region13: #{tpu_custom_call.1} parent=11 // pred_check
          %p118 = pneg %p56
        $region14: #{tpu_custom_call.1} parent=11 // pred_check_branch
          %120 = sbr.rel (%p118) target = $region16
        $region15: #{tpu_custom_call.1} parent=11 // pred_region
          _
        $region16: #{tpu_custom_call.1} parent=11 // pred_fallthru
          _
        // Predicated region
        $region17: #{tpu_custom_call.1} parent=11 // pred_check
          %p121 = pneg %p77
        $region18: #{tpu_custom_call.1} parent=11 // pred_check_branch
          %123 = sbr.rel (%p121) target = $region20
        $region19: #{tpu_custom_call.1} parent=11 // pred_region
          _
        $region20: #{tpu_custom_call.1} parent=11 // pred_fallthru
          _
      $region12: #{tpu_custom_call.1} parent=5 // pred_fallthru
        _
      %p124 = scmp.lt.s32.totalorder %s9, 2
      // Predicated region
      $region21: #{tpu_custom_call.1} parent=5 // pred_check
        %p125 = pneg %p124
      $region22: #{tpu_custom_call.1} parent=5 // pred_check_branch
        %127 = sbr.rel (%p125) target = $region24
      $region23: #{tpu_custom_call.1} parent=5 // pred_region
        // Predicated region
        $region25: #{tpu_custom_call.1} parent=23 // pred_check
          %p128 = pneg %p29
        $region26: #{tpu_custom_call.1} parent=23 // pred_check_branch
          %130 = sbr.rel (%p128) target = $region28
        $region27: #{tpu_custom_call.1} parent=23 // pred_region
          %s131 = smul.u32 64, %s9
          %s132 = ssub.s32 80, %s131
          %p133 = scmp.lt.s32.totalorder %s132, 64
          %s134 = scalar_select %p133, %s132, 64
          %s135 = smul.u32 128, %s134
          %p136 = scmp.lt.s32.totalorder %s131, 79
          %s137 = scalar_select %p136, %s131, 79
          %s138 = smul.addr %s137, 8
          %s139 = scalar_lea.vmem %s0, %s138
          %s140 = smul.u32 64, %s9
          %s141 = ssub.s32 80, %s140
          %p142 = scmp.lt.s32.totalorder %s141, 64
          %s143 = scalar_select %p142, %s141, 64
          %s144 = smul.u32 128, %s143
        $region28: #{tpu_custom_call.1} parent=23 // pred_fallthru
          _
      $region24: #{tpu_custom_call.1} parent=5 // pred_fallthru
        _
      %p145 = scmp.le.s32.totalorder 1, %s9
      %p146 = scmp.lt.s32.totalorder %s9, 3
      %p147 = pnand %p145, %p146
      %p148 = pneg %p147
      // Predicated region
      $region29: #{tpu_custom_call.1} parent=5 // pred_check
        _
      $region30: #{tpu_custom_call.1} parent=5 // pred_check_branch
        %150 = sbr.rel (%p147) target = $region32
      $region31: #{tpu_custom_call.1} parent=5 // pred_region
        %s151 = ssub.s32 %s9, 1
        %s152 = smul.u32 64, %s14
        %s153 = ssub.s32 80, %s152
        %p154 = scmp.lt.s32.totalorder %s153, 64
        %s155 = scalar_select %p154, %s153, 64
        %s156 = smul.u32 128, %s155
        %p157 = scmp.lt.s32.totalorder %s152, 79
        %s158 = scalar_select %p157, %s152, 79
        %s159 = smul.addr %s158, 8
        %s160 = scalar_lea.vmem %s0, %s159
        %p161 = pneg %p35
        %p162 = pneg %p32
        %p163 = pneg %p56
        %p164 = pneg %p53
        %p165 = pneg %p77
        %p166 = pneg %p74
        %p167 = pneg %p103
        %p168 = pneg %p100
        %s169 = sand.u32 %s90, 1
        %s170 = sand.u32 %s90, 1
        %s171 = smul.addr %s170, 512
        %s172 = scalar_lea.vmem [#allocation2], %s171
        %s173 = smul.u32 64, %s14
        %s174 = ssub.s32 80, %s173
        %p175 = scmp.lt.s32.totalorder %s174, 64
        %s176 = scalar_select %p175, %s174, 64
        %s177 = smul.u32 128, %s176
        %p178 = scmp.lt.s32.totalorder %s173, 79
        %s179 = scalar_select %p178, %s173, 79
        %s180 = smul.addr %s179, 8
        %s181 = scalar_lea.vmem %s0, %s180
        %s182 = smul.u32 64, %s14
        %s183 = ssub.s32 80, %s182
        %p184 = scmp.lt.s32.totalorder %s183, 64
        %s185 = scalar_select %p184, %s183, 64
        %s186 = smul.u32 128, %s185
        %s187 = smul.u32 64, %s14
        %s188 = ssub.s32 80, %s187
        %p189 = scmp.lt.s32.totalorder %s188, 64
        %s190 = scalar_select %p189, %s188, 64
        %s191 = smul.u32 128, %s190
        %v192 = vld [vmem:[%s181] sm:$0xff]
        %v193 = vld [vmem:[%s181 + $0x8] sm:$0xff]
        %v194 = vld [vmem:[%s181 + $0x10] sm:$0xff]
        %v195 = vld [vmem:[%s181 + $0x18] sm:$0xff]
        %v196 = vld [vmem:[%s181 + $0x20] sm:$0xff]
        %v197 = vld [vmem:[%s181 + $0x28] sm:$0xff]
        %v198 = vld [vmem:[%s181 + $0x30] sm:$0xff]
        %v199 = vld [vmem:[%s181 + $0x38] sm:$0xff]
        %v200 = vld [vmem:[%s181 + $0x40] sm:$0xff]
        %v201 = vld [vmem:[%s181 + $0x48] sm:$0xff]
        %v202 = vld [vmem:[%s181 + $0x50] sm:$0xff]
        %v203 = vld [vmem:[%s181 + $0x58] sm:$0xff]
        %v204 = vld [vmem:[%s181 + $0x60] sm:$0xff]
        %v205 = vld [vmem:[%s181 + $0x68] sm:$0xff]
        %v206 = vld [vmem:[%s181 + $0x70] sm:$0xff]
        %v207 = vld [vmem:[%s181 + $0x78] sm:$0xff]
        %v208 = vld [vmem:[%s181 + $0x80] sm:$0xff]
        %v209 = vld [vmem:[%s181 + $0x88] sm:$0xff]
        %v210 = vld [vmem:[%s181 + $0x90] sm:$0xff]
        %v211 = vld [vmem:[%s181 + $0x98] sm:$0xff]
        %v212 = vld [vmem:[%s181 + $0xa0] sm:$0xff]
        %v213 = vld [vmem:[%s181 + $0xa8] sm:$0xff]
        %v214 = vld [vmem:[%s181 + $0xb0] sm:$0xff]
        %v215 = vld [vmem:[%s181 + $0xb8] sm:$0xff]
        %v216 = vld [vmem:[%s181 + $0xc0] sm:$0xff]
        %v217 = vld [vmem:[%s181 + $0xc8] sm:$0xff]
        %v218 = vld [vmem:[%s181 + $0xd0] sm:$0xff]
        %v219 = vld [vmem:[%s181 + $0xd8] sm:$0xff]
        %v220 = vld [vmem:[%s181 + $0xe0] sm:$0xff]
        %v221 = vld [vmem:[%s181 + $0xe8] sm:$0xff]
        %v222 = vld [vmem:[%s181 + $0xf0] sm:$0xff]
        %v223 = vld [vmem:[%s181 + $0xf8] sm:$0xff]
        %v224 = vld [vmem:[%s181 + $0x100] sm:$0xff]
        %v225 = vld [vmem:[%s181 + $0x108] sm:$0xff]
        %v226 = vld [vmem:[%s181 + $0x110] sm:$0xff]
        %v227 = vld [vmem:[%s181 + $0x118] sm:$0xff]
        %v228 = vld [vmem:[%s181 + $0x120] sm:$0xff]
        %v229 = vld [vmem:[%s181 + $0x128] sm:$0xff]
        %v230 = vld [vmem:[%s181 + $0x130] sm:$0xff]
        %v231 = vld [vmem:[%s181 + $0x138] sm:$0xff]
        %v232 = vld [vmem:[%s181 + $0x140] sm:$0xff]
        %v233 = vld [vmem:[%s181 + $0x148] sm:$0xff]
        %v234 = vld [vmem:[%s181 + $0x150] sm:$0xff]
        %v235 = vld [vmem:[%s181 + $0x158] sm:$0xff]
        %v236 = vld [vmem:[%s181 + $0x160] sm:$0xff]
        %v237 = vld [vmem:[%s181 + $0x168] sm:$0xff]
        %v238 = vld [vmem:[%s181 + $0x170] sm:$0xff]
        %v239 = vld [vmem:[%s181 + $0x178] sm:$0xff]
        %v240 = vld [vmem:[%s181 + $0x180] sm:$0xff]
        %v241 = vld [vmem:[%s181 + $0x188] sm:$0xff]
        %v242 = vld [vmem:[%s181 + $0x190] sm:$0xff]
        %v243 = vld [vmem:[%s181 + $0x198] sm:$0xff]
        %v244 = vld [vmem:[%s181 + $0x1a0] sm:$0xff]
        %v245 = vld [vmem:[%s181 + $0x1a8] sm:$0xff]
        %v246 = vld [vmem:[%s181 + $0x1b0] sm:$0xff]
        %v247 = vld [vmem:[%s181 + $0x1b8] sm:$0xff]
        %v248 = vld [vmem:[%s181 + $0x1c0] sm:$0xff]
        %v249 = vld [vmem:[%s181 + $0x1c8] sm:$0xff]
        %v250 = vld [vmem:[%s181 + $0x1d0] sm:$0xff]
        %v251 = vld [vmem:[%s181 + $0x1d8] sm:$0xff]
        %v252 = vld [vmem:[%s181 + $0x1e0] sm:$0xff]
        %v253 = vld [vmem:[%s181 + $0x1e8] sm:$0xff]
        %v254 = vld [vmem:[%s181 + $0x1f0] sm:$0xff]
        %v255 = vld [vmem:[%s181 + $0x1f8] sm:$0xff]
        %v256 = vld [vmem:[%s1] sm:$0xff]
        %v257 = vld [vmem:[%s1 + $0x8] sm:$0xff]
        %v258 = vld [vmem:[%s1 + $0x10] sm:$0xff]
        %v259 = vld [vmem:[%s1 + $0x18] sm:$0xff]
        %v260 = vld [vmem:[%s2] sm:$0x1]
        %v262 = vlaneseq
        %v263 = vshrl.u32 %v262, 7
        %v264 = vsub.s32 0, %v263
        %v265 = vrot.slane %v260, %v264
        %vm267 = vcmask 261120
        %v269 = vsel %vm267, %v192, 0
        %v272 = vsel %vm267, %v193, 0
        %v275 = vsel %vm267, %v194, 0
        %v278 = vsel %vm267, %v195, 0
        %v281 = vsel %vm267, %v196, 0
        %v284 = vsel %vm267, %v197, 0
        %v287 = vsel %vm267, %v198, 0
        %v290 = vsel %vm267, %v199, 0
        %v293 = vsel %vm267, %v200, 0
        %v296 = vsel %vm267, %v201, 0
        %v299 = vsel %vm267, %v202, 0
        %v302 = vsel %vm267, %v203, 0
        %v305 = vsel %vm267, %v204, 0
        %v308 = vsel %vm267, %v205, 0
        %v311 = vsel %vm267, %v206, 0
        %v314 = vsel %vm267, %v207, 0
        %v317 = vsel %vm267, %v208, 0
        %v320 = vsel %vm267, %v209, 0
        %v323 = vsel %vm267, %v210, 0
        %v326 = vsel %vm267, %v211, 0
        %v329 = vsel %vm267, %v212, 0
        %v332 = vsel %vm267, %v213, 0
        %v335 = vsel %vm267, %v214, 0
        %v338 = vsel %vm267, %v215, 0
        %v341 = vsel %vm267, %v216, 0
        %v344 = vsel %vm267, %v217, 0
        %v347 = vsel %vm267, %v218, 0
        %v350 = vsel %vm267, %v219, 0
        %v353 = vsel %vm267, %v220, 0
        %v356 = vsel %vm267, %v221, 0
        %v359 = vsel %vm267, %v222, 0
        %v362 = vsel %vm267, %v223, 0
        %v365 = vsel %vm267, %v224, 0
        %v368 = vsel %vm267, %v225, 0
        %v371 = vsel %vm267, %v226, 0
        %v374 = vsel %vm267, %v227, 0
        %v377 = vsel %vm267, %v228, 0
        %v380 = vsel %vm267, %v229, 0
        %v383 = vsel %vm267, %v230, 0
        %v386 = vsel %vm267, %v231, 0
        %v389 = vsel %vm267, %v232, 0
        %v392 = vsel %vm267, %v233, 0
        %v395 = vsel %vm267, %v234, 0
        %v398 = vsel %vm267, %v235, 0
        %v401 = vsel %vm267, %v236, 0
        %v404 = vsel %vm267, %v237, 0
        %v407 = vsel %vm267, %v238, 0
        %v410 = vsel %vm267, %v239, 0
        %v413 = vsel %vm267, %v240, 0
        %v416 = vsel %vm267, %v241, 0
        %v419 = vsel %vm267, %v242, 0
        %v422 = vsel %vm267, %v243, 0
        %v425 = vsel %vm267, %v244, 0
        %v428 = vsel %vm267, %v245, 0
        %v431 = vsel %vm267, %v246, 0
        %v434 = vsel %vm267, %v247, 0
        %v437 = vsel %vm267, %v248, 0
        %v440 = vsel %vm267, %v249, 0
        %v443 = vsel %vm267, %v250, 0
        %v446 = vsel %vm267, %v251, 0
        %v449 = vsel %vm267, %v252, 0
        %v452 = vsel %vm267, %v253, 0
        %v455 = vsel %vm267, %v254, 0
        %v458 = vsel %vm267, %v255, 0
        %460 = vmatprep.subr.mxu0 0.0
        %461 = vmatpush1.msra.mxu0 0.0
        %462 = vmatprep.subr.mxu0 0.0
        %463 = vmatpush1.msra.mxu0 0.0
        %464 = vmatprep.subr.mxu0 0.0
        %465 = vmatpush1.msra.mxu0 0.0
        %466 = vmatprep.subr.mxu0 0.0
        %467 = vmatpush1.msra.mxu0 0.0
        %468 = vmatprep.subr.mxu0 0.0
        %469 = vmatpush1.msra.mxu0 0.0
        %470 = vmatprep.subr.mxu0 0.0
        %471 = vmatpush1.msra.mxu0 0.0
        %472 = vmatprep.subr.mxu0 0.0
        %473 = vmatpush1.msra.mxu0 0.0
        %474 = vmatprep.subr.mxu0 0.0
        %475 = vmatpush1.msra.mxu0 0.0
        %476 = vmatprep.subr.mxu0 0.0
        %477 = vmatpush1.msra.mxu0 0.0
        %478 = vmatprep.subr.mxu0 0.0
        %479 = vmatpush1.msra.mxu0 0.0
        %480 = vmatprep.subr.mxu0 0.0
        %481 = vmatpush1.msra.mxu0 0.0
        %482 = vmatprep.subr.mxu0 0.0
        %483 = vmatpush1.msra.mxu0 0.0
        %484 = vmatprep.subr.mxu0 0.0
        %485 = vmatpush1.msra.mxu0 %v259
        %486 = vmatprep.subr.mxu0 0.0
        %487 = vmatpush1.msra.mxu0 %v258
        %488 = vmatprep.subr.mxu0 0.0
        %489 = vmatpush1.msra.mxu0 %v257
        %490 = vmatprep.subr.mxu0 0.0
        %491 = vmatpush1.msra.mxu0 %v256
        %492 = vmatprep.subr.mxu0 0.0
        %493 = vmatpush2.msra.mxu0 0.0
        %494 = vmatprep.subr.mxu0 0.0
        %495 = vmatpush2.msra.mxu0 0.0
        %496 = vmatprep.subr.mxu0 0.0
        %497 = vmatpush2.msra.mxu0 0.0
        %498 = vmatprep.subr.mxu0 0.0
        %499 = vmatpush2.msra.mxu0 0.0
        %500 = vmatprep.subr.mxu0 0.0
        %501 = vmatpush2.msra.mxu0 0.0
        %502 = vmatprep.subr.mxu0 0.0
        %503 = vmatpush2.msra.mxu0 0.0
        %504 = vmatprep.subr.mxu0 0.0
        %505 = vmatpush2.msra.mxu0 0.0
        %506 = vmatprep.subr.mxu0 0.0
        %507 = vmatpush2.msra.mxu0 0.0
        %508 = vmatprep.subr.mxu0 0.0
        %509 = vmatpush2.msra.mxu0 0.0
        %510 = vmatprep.subr.mxu0 0.0
        %511 = vmatpush2.msra.mxu0 0.0
        %512 = vmatprep.subr.mxu0 0.0
        %513 = vmatpush2.msra.mxu0 0.0
        %514 = vmatprep.subr.mxu0 0.0
        %515 = vmatpush2.msra.mxu0 0.0
        %516 = vmatprep.subr.mxu0 0.0
        %517 = vmatpush2.msra.mxu0 0.0
        %518 = vmatprep.subr.mxu0 0.0
        %519 = vmatpush2.msra.mxu0 0.0
        %520 = vmatprep.subr.mxu0 0.0
        %521 = vmatpush2.msra.mxu0 0.0
        %522 = vmatprep.subr.mxu0 0.0
        %523 = vmatpush2.msra.mxu0 0.0
        %524 = vmatprep.mubr.f32.mxu0 0.0
        %525 = vmatmul.mubr.f32.gmra.mxu0 %v269
        %v526 = vpop.f32.mrf.mxu0
        %v527 = vadd.f32 %v265, %v526
        %v528 = vpop.f32.mrf.mxu0
        %529 = vmatprep.mubr.f32.mxu0 0.0
        %530 = vmatmul.mubr.f32.gmra.mxu0 %v272
        %v531 = vpop.f32.mrf.mxu0
        %v532 = vadd.f32 %v265, %v531
        %v533 = vpop.f32.mrf.mxu0
        %534 = vmatprep.mubr.f32.mxu0 0.0
        %535 = vmatmul.mubr.f32.gmra.mxu0 %v275
        %v536 = vpop.f32.mrf.mxu0
        %v537 = vadd.f32 %v265, %v536
        %v538 = vpop.f32.mrf.mxu0
        %539 = vmatprep.mubr.f32.mxu0 0.0
        %540 = vmatmul.mubr.f32.gmra.mxu0 %v278
        %v541 = vpop.f32.mrf.mxu0
        %v542 = vadd.f32 %v265, %v541
        %v543 = vpop.f32.mrf.mxu0
        %544 = vmatprep.mubr.f32.mxu0 0.0
        %545 = vmatmul.mubr.f32.gmra.mxu0 %v281
        %v546 = vpop.f32.mrf.mxu0
        %v547 = vadd.f32 %v265, %v546
        %v548 = vpop.f32.mrf.mxu0
        %549 = vmatprep.mubr.f32.mxu0 0.0
        %550 = vmatmul.mubr.f32.gmra.mxu0 %v284
        %v551 = vpop.f32.mrf.mxu0
        %v552 = vadd.f32 %v265, %v551
        %v553 = vpop.f32.mrf.mxu0
        %554 = vmatprep.mubr.f32.mxu0 0.0
        %555 = vmatmul.mubr.f32.gmra.mxu0 %v287
        %v556 = vpop.f32.mrf.mxu0
        %v557 = vadd.f32 %v265, %v556
        %v558 = vpop.f32.mrf.mxu0
        %559 = vmatprep.mubr.f32.mxu0 0.0
        %560 = vmatmul.mubr.f32.gmra.mxu0 %v290
        %v561 = vpop.f32.mrf.mxu0
        %v562 = vadd.f32 %v265, %v561
        %v563 = vpop.f32.mrf.mxu0
        %564 = vmatprep.mubr.f32.mxu0 0.0
        %565 = vmatmul.mubr.f32.gmra.mxu0 %v293
        %v566 = vpop.f32.mrf.mxu0
        %v567 = vadd.f32 %v265, %v566
        %v568 = vpop.f32.mrf.mxu0
        %569 = vmatprep.mubr.f32.mxu0 0.0
        %570 = vmatmul.mubr.f32.gmra.mxu0 %v296
        %v571 = vpop.f32.mrf.mxu0
        %v572 = vadd.f32 %v265, %v571
        %v573 = vpop.f32.mrf.mxu0
        %574 = vmatprep.mubr.f32.mxu0 0.0
        %575 = vmatmul.mubr.f32.gmra.mxu0 %v299
        %v576 = vpop.f32.mrf.mxu0
        %v577 = vadd.f32 %v265, %v576
        %v578 = vpop.f32.mrf.mxu0
        %579 = vmatprep.mubr.f32.mxu0 0.0
        %580 = vmatmul.mubr.f32.gmra.mxu0 %v302
        %v581 = vpop.f32.mrf.mxu0
        %v582 = vadd.f32 %v265, %v581
        %v583 = vpop.f32.mrf.mxu0
        %584 = vmatprep.mubr.f32.mxu0 0.0
        %585 = vmatmul.mubr.f32.gmra.mxu0 %v305
        %v586 = vpop.f32.mrf.mxu0
        %v587 = vadd.f32 %v265, %v586
        %v588 = vpop.f32.mrf.mxu0
        %589 = vmatprep.mubr.f32.mxu0 0.0
        %590 = vmatmul.mubr.f32.gmra.mxu0 %v308
        %v591 = vpop.f32.mrf.mxu0
        %v592 = vadd.f32 %v265, %v591
        %v593 = vpop.f32.mrf.mxu0
        %594 = vmatprep.mubr.f32.mxu0 0.0
        %595 = vmatmul.mubr.f32.gmra.mxu0 %v311
        %v596 = vpop.f32.mrf.mxu0
        %v597 = vadd.f32 %v265, %v596
        %v598 = vpop.f32.mrf.mxu0
        %599 = vmatprep.mubr.f32.mxu0 0.0
        %600 = vmatmul.mubr.f32.gmra.mxu0 %v314
        %v601 = vpop.f32.mrf.mxu0
        %v602 = vadd.f32 %v265, %v601
        %v603 = vpop.f32.mrf.mxu0
        %604 = vmatprep.mubr.f32.mxu0 0.0
        %605 = vmatmul.mubr.f32.gmra.mxu0 %v317
        %v606 = vpop.f32.mrf.mxu0
        %v607 = vadd.f32 %v265, %v606
        %v608 = vpop.f32.mrf.mxu0
        %609 = vmatprep.mubr.f32.mxu0 0.0
        %610 = vmatmul.mubr.f32.gmra.mxu0 %v320
        %v611 = vpop.f32.mrf.mxu0
        %v612 = vadd.f32 %v265, %v611
        %v613 = vpop.f32.mrf.mxu0
        %614 = vmatprep.mubr.f32.mxu0 0.0
        %615 = vmatmul.mubr.f32.gmra.mxu0 %v323
        %v616 = vpop.f32.mrf.mxu0
        %v617 = vadd.f32 %v265, %v616
        %v618 = vpop.f32.mrf.mxu0
        %619 = vmatprep.mubr.f32.mxu0 0.0
        %620 = vmatmul.mubr.f32.gmra.mxu0 %v326
        %v621 = vpop.f32.mrf.mxu0
        %v622 = vadd.f32 %v265, %v621
        %v623 = vpop.f32.mrf.mxu0
        %624 = vmatprep.mubr.f32.mxu0 0.0
        %625 = vmatmul.mubr.f32.gmra.mxu0 %v329
        %v626 = vpop.f32.mrf.mxu0
        %v627 = vadd.f32 %v265, %v626
        %v628 = vpop.f32.mrf.mxu0
        %629 = vmatprep.mubr.f32.mxu0 0.0
        %630 = vmatmul.mubr.f32.gmra.mxu0 %v332
        %v631 = vpop.f32.mrf.mxu0
        %v632 = vadd.f32 %v265, %v631
        %v633 = vpop.f32.mrf.mxu0
        %634 = vmatprep.mubr.f32.mxu0 0.0
        %635 = vmatmul.mubr.f32.gmra.mxu0 %v335
        %v636 = vpop.f32.mrf.mxu0
        %v637 = vadd.f32 %v265, %v636
        %v638 = vpop.f32.mrf.mxu0
        %639 = vmatprep.mubr.f32.mxu0 0.0
        %640 = vmatmul.mubr.f32.gmra.mxu0 %v338
        %v641 = vpop.f32.mrf.mxu0
        %v642 = vadd.f32 %v265, %v641
        %v643 = vpop.f32.mrf.mxu0
        %644 = vmatprep.mubr.f32.mxu0 0.0
        %645 = vmatmul.mubr.f32.gmra.mxu0 %v341
        %v646 = vpop.f32.mrf.mxu0
        %v647 = vadd.f32 %v265, %v646
        %v648 = vpop.f32.mrf.mxu0
        %649 = vmatprep.mubr.f32.mxu0 0.0
        %650 = vmatmul.mubr.f32.gmra.mxu0 %v344
        %v651 = vpop.f32.mrf.mxu0
        %v652 = vadd.f32 %v265, %v651
        %v653 = vpop.f32.mrf.mxu0
        %654 = vmatprep.mubr.f32.mxu0 0.0
        %655 = vmatmul.mubr.f32.gmra.mxu0 %v347
        %v656 = vpop.f32.mrf.mxu0
        %v657 = vadd.f32 %v265, %v656
        %v658 = vpop.f32.mrf.mxu0
        %659 = vmatprep.mubr.f32.mxu0 0.0
        %660 = vmatmul.mubr.f32.gmra.mxu0 %v350
        %v661 = vpop.f32.mrf.mxu0
        %v662 = vadd.f32 %v265, %v661
        %v663 = vpop.f32.mrf.mxu0
        %664 = vmatprep.mubr.f32.mxu0 0.0
        %665 = vmatmul.mubr.f32.gmra.mxu0 %v353
        %v666 = vpop.f32.mrf.mxu0
        %v667 = vadd.f32 %v265, %v666
        %v668 = vpop.f32.mrf.mxu0
        %669 = vmatprep.mubr.f32.mxu0 0.0
        %670 = vmatmul.mubr.f32.gmra.mxu0 %v356
        %v671 = vpop.f32.mrf.mxu0
        %v672 = vadd.f32 %v265, %v671
        %v673 = vpop.f32.mrf.mxu0
        %674 = vmatprep.mubr.f32.mxu0 0.0
        %675 = vmatmul.mubr.f32.gmra.mxu0 %v359
        %v676 = vpop.f32.mrf.mxu0
        %v677 = vadd.f32 %v265, %v676
        %v678 = vpop.f32.mrf.mxu0
        %679 = vmatprep.mubr.f32.mxu0 0.0
        %680 = vmatmul.mubr.f32.gmra.mxu0 %v362
        %v681 = vpop.f32.mrf.mxu0
        %v682 = vadd.f32 %v265, %v681
        %v683 = vpop.f32.mrf.mxu0
        %684 = vmatprep.mubr.f32.mxu0 0.0
        %685 = vmatmul.mubr.f32.gmra.mxu0 %v365
        %v686 = vpop.f32.mrf.mxu0
        %v687 = vadd.f32 %v265, %v686
        %v688 = vpop.f32.mrf.mxu0
        %689 = vmatprep.mubr.f32.mxu0 0.0
        %690 = vmatmul.mubr.f32.gmra.mxu0 %v368
        %v691 = vpop.f32.mrf.mxu0
        %v692 = vadd.f32 %v265, %v691
        %v693 = vpop.f32.mrf.mxu0
        %694 = vmatprep.mubr.f32.mxu0 0.0
        %695 = vmatmul.mubr.f32.gmra.mxu0 %v371
        %v696 = vpop.f32.mrf.mxu0
        %v697 = vadd.f32 %v265, %v696
        %v698 = vpop.f32.mrf.mxu0
        %699 = vmatprep.mubr.f32.mxu0 0.0
        %700 = vmatmul.mubr.f32.gmra.mxu0 %v374
        %v701 = vpop.f32.mrf.mxu0
        %v702 = vadd.f32 %v265, %v701
        %v703 = vpop.f32.mrf.mxu0
        %704 = vmatprep.mubr.f32.mxu0 0.0
        %705 = vmatmul.mubr.f32.gmra.mxu0 %v377
        %v706 = vpop.f32.mrf.mxu0
        %v707 = vadd.f32 %v265, %v706
        %v708 = vpop.f32.mrf.mxu0
        %709 = vmatprep.mubr.f32.mxu0 0.0
        %710 = vmatmul.mubr.f32.gmra.mxu0 %v380
        %v711 = vpop.f32.mrf.mxu0
        %v712 = vadd.f32 %v265, %v711
        %v713 = vpop.f32.mrf.mxu0
        %714 = vmatprep.mubr.f32.mxu0 0.0
        %715 = vmatmul.mubr.f32.gmra.mxu0 %v383
        %v716 = vpop.f32.mrf.mxu0
        %v717 = vadd.f32 %v265, %v716
        %v718 = vpop.f32.mrf.mxu0
        %719 = vmatprep.mubr.f32.mxu0 0.0
        %720 = vmatmul.mubr.f32.gmra.mxu0 %v386
        %v721 = vpop.f32.mrf.mxu0
        %v722 = vadd.f32 %v265, %v721
        %v723 = vpop.f32.mrf.mxu0
        %724 = vmatprep.mubr.f32.mxu0 0.0
        %725 = vmatmul.mubr.f32.gmra.mxu0 %v389
        %v726 = vpop.f32.mrf.mxu0
        %v727 = vadd.f32 %v265, %v726
        %v728 = vpop.f32.mrf.mxu0
        %729 = vmatprep.mubr.f32.mxu0 0.0
        %730 = vmatmul.mubr.f32.gmra.mxu0 %v392
        %v731 = vpop.f32.mrf.mxu0
        %v732 = vadd.f32 %v265, %v731
        %v733 = vpop.f32.mrf.mxu0
        %734 = vmatprep.mubr.f32.mxu0 0.0
        %735 = vmatmul.mubr.f32.gmra.mxu0 %v395
        %v736 = vpop.f32.mrf.mxu0
        %v737 = vadd.f32 %v265, %v736
        %v738 = vpop.f32.mrf.mxu0
        %739 = vmatprep.mubr.f32.mxu0 0.0
        %740 = vmatmul.mubr.f32.gmra.mxu0 %v398
        %v741 = vpop.f32.mrf.mxu0
        %v742 = vadd.f32 %v265, %v741
        %v743 = vpop.f32.mrf.mxu0
        %744 = vmatprep.mubr.f32.mxu0 0.0
        %745 = vmatmul.mubr.f32.gmra.mxu0 %v401
        %v746 = vpop.f32.mrf.mxu0
        %v747 = vadd.f32 %v265, %v746
        %v748 = vpop.f32.mrf.mxu0
        %749 = vmatprep.mubr.f32.mxu0 0.0
        %750 = vmatmul.mubr.f32.gmra.mxu0 %v404
        %v751 = vpop.f32.mrf.mxu0
        %v752 = vadd.f32 %v265, %v751
        %v753 = vpop.f32.mrf.mxu0
        %754 = vmatprep.mubr.f32.mxu0 0.0
        %755 = vmatmul.mubr.f32.gmra.mxu0 %v407
        %v756 = vpop.f32.mrf.mxu0
        %v757 = vadd.f32 %v265, %v756
        %v758 = vpop.f32.mrf.mxu0
        %759 = vmatprep.mubr.f32.mxu0 0.0
        %760 = vmatmul.mubr.f32.gmra.mxu0 %v410
        %v761 = vpop.f32.mrf.mxu0
        %v762 = vadd.f32 %v265, %v761
        %v763 = vpop.f32.mrf.mxu0
        %764 = vmatprep.mubr.f32.mxu0 0.0
        %765 = vmatmul.mubr.f32.gmra.mxu0 %v413
        %v766 = vpop.f32.mrf.mxu0
        %v767 = vadd.f32 %v265, %v766
        %v768 = vpop.f32.mrf.mxu0
        %769 = vmatprep.mubr.f32.mxu0 0.0
        %770 = vmatmul.mubr.f32.gmra.mxu0 %v416
        %v771 = vpop.f32.mrf.mxu0
        %v772 = vadd.f32 %v265, %v771
        %v773 = vpop.f32.mrf.mxu0
        %774 = vmatprep.mubr.f32.mxu0 0.0
        %775 = vmatmul.mubr.f32.gmra.mxu0 %v419
        %v776 = vpop.f32.mrf.mxu0
        %v777 = vadd.f32 %v265, %v776
        %v778 = vpop.f32.mrf.mxu0
        %779 = vmatprep.mubr.f32.mxu0 0.0
        %780 = vmatmul.mubr.f32.gmra.mxu0 %v422
        %v781 = vpop.f32.mrf.mxu0
        %v782 = vadd.f32 %v265, %v781
        %v783 = vpop.f32.mrf.mxu0
        %784 = vmatprep.mubr.f32.mxu0 0.0
        %785 = vmatmul.mubr.f32.gmra.mxu0 %v425
        %v786 = vpop.f32.mrf.mxu0
        %v787 = vadd.f32 %v265, %v786
        %v788 = vpop.f32.mrf.mxu0
        %789 = vmatprep.mubr.f32.mxu0 0.0
        %790 = vmatmul.mubr.f32.gmra.mxu0 %v428
        %v791 = vpop.f32.mrf.mxu0
        %v792 = vadd.f32 %v265, %v791
        %v793 = vpop.f32.mrf.mxu0
        %794 = vmatprep.mubr.f32.mxu0 0.0
        %795 = vmatmul.mubr.f32.gmra.mxu0 %v431
        %v796 = vpop.f32.mrf.mxu0
        %v797 = vadd.f32 %v265, %v796
        %v798 = vpop.f32.mrf.mxu0
        %799 = vmatprep.mubr.f32.mxu0 0.0
        %800 = vmatmul.mubr.f32.gmra.mxu0 %v434
        %v801 = vpop.f32.mrf.mxu0
        %v802 = vadd.f32 %v265, %v801
        %v803 = vpop.f32.mrf.mxu0
        %804 = vmatprep.mubr.f32.mxu0 0.0
        %805 = vmatmul.mubr.f32.gmra.mxu0 %v437
        %v806 = vpop.f32.mrf.mxu0
        %v807 = vadd.f32 %v265, %v806
        %v808 = vpop.f32.mrf.mxu0
        %809 = vmatprep.mubr.f32.mxu0 0.0
        %810 = vmatmul.mubr.f32.gmra.mxu0 %v440
        %v811 = vpop.f32.mrf.mxu0
        %v812 = vadd.f32 %v265, %v811
        %v813 = vpop.f32.mrf.mxu0
        %814 = vmatprep.mubr.f32.mxu0 0.0
        %815 = vmatmul.mubr.f32.gmra.mxu0 %v443
        %v816 = vpop.f32.mrf.mxu0
        %v817 = vadd.f32 %v265, %v816
        %v818 = vpop.f32.mrf.mxu0
        %819 = vmatprep.mubr.f32.mxu0 0.0
        %820 = vmatmul.mubr.f32.gmra.mxu0 %v446
        %v821 = vpop.f32.mrf.mxu0
        %v822 = vadd.f32 %v265, %v821
        %v823 = vpop.f32.mrf.mxu0
        %824 = vmatprep.mubr.f32.mxu0 0.0
        %825 = vmatmul.mubr.f32.gmra.mxu0 %v449
        %v826 = vpop.f32.mrf.mxu0
        %v827 = vadd.f32 %v265, %v826
        %v828 = vpop.f32.mrf.mxu0
        %829 = vmatprep.mubr.f32.mxu0 0.0
        %830 = vmatmul.mubr.f32.gmra.mxu0 %v452
        %v831 = vpop.f32.mrf.mxu0
        %v832 = vadd.f32 %v265, %v831
        %v833 = vpop.f32.mrf.mxu0
        %834 = vmatprep.mubr.f32.mxu0 0.0
        %835 = vmatmul.mubr.f32.gmra.mxu0 %v455
        %v836 = vpop.f32.mrf.mxu0
        %v837 = vadd.f32 %v265, %v836
        %v838 = vpop.f32.mrf.mxu0
        %839 = vmatprep.mubr.f32.mxu0 0.0
        %840 = vmatmul.mubr.f32.gmra.mxu0 %v458
        %v841 = vpop.f32.mrf.mxu0
        %v842 = vadd.f32 %v265, %v841
        %v843 = vpop.f32.mrf.mxu0
        %844 = vdwg.mxu0
        %v845 = vlaneseq
        %v846 = vand.u32 %v845, 127
        %vm847 = vcmp.eq.s32.totalorder %v846, 0
        %v848 = vmul.f32 %v527, 1.442695
        %v849 = vpow.pop %v848
        %v850 = vmul.f32 %v532, 1.442695
        %v851 = vpow.pop %v850
        %v852 = vmul.f32 %v537, 1.442695
        %v853 = vpow.pop %v852
        %v854 = vmul.f32 %v542, 1.442695
        %v855 = vpow.pop %v854
        %v856 = vmul.f32 %v547, 1.442695
        %v857 = vpow.pop %v856
        %v858 = vmul.f32 %v552, 1.442695
        %v859 = vpow.pop %v858
        %v860 = vmul.f32 %v557, 1.442695
        %v861 = vpow.pop %v860
        %v862 = vmul.f32 %v562, 1.442695
        %v863 = vpow.pop %v862
        %v864 = vmul.f32 %v567, 1.442695
        %v865 = vpow.pop %v864
        %v866 = vmul.f32 %v572, 1.442695
        %v867 = vpow.pop %v866
        %v868 = vmul.f32 %v577, 1.442695
        %v869 = vpow.pop %v868
        %v870 = vmul.f32 %v582, 1.442695
        %v871 = vpow.pop %v870
        %v872 = vmul.f32 %v587, 1.442695
        %v873 = vpow.pop %v872
        %v874 = vmul.f32 %v592, 1.442695
        %v875 = vpow.pop %v874
        %v876 = vmul.f32 %v597, 1.442695
        %v877 = vpow.pop %v876
        %v878 = vmul.f32 %v602, 1.442695
        %v879 = vpow.pop %v878
        %v880 = vmul.f32 %v607, 1.442695
        %v881 = vpow.pop %v880
        %v882 = vmul.f32 %v612, 1.442695
        %v883 = vpow.pop %v882
        %v884 = vmul.f32 %v617, 1.442695
        %v885 = vpow.pop %v884
        %v886 = vmul.f32 %v622, 1.442695
        %v887 = vpow.pop %v886
        %v888 = vmul.f32 %v627, 1.442695
        %v889 = vpow.pop %v888
        %v890 = vmul.f32 %v632, 1.442695
        %v891 = vpow.pop %v890
        %v892 = vmul.f32 %v637, 1.442695
        %v893 = vpow.pop %v892
        %v894 = vmul.f32 %v642, 1.442695
        %v895 = vpow.pop %v894
        %v896 = vmul.f32 %v647, 1.442695
        %v897 = vpow.pop %v896
        %v898 = vmul.f32 %v652, 1.442695
        %v899 = vpow.pop %v898
        %v900 = vmul.f32 %v657, 1.442695
        %v901 = vpow.pop %v900
        %v902 = vmul.f32 %v662, 1.442695
        %v903 = vpow.pop %v902
        %v904 = vmul.f32 %v667, 1.442695
        %v905 = vpow.pop %v904
        %v906 = vmul.f32 %v672, 1.442695
        %v907 = vpow.pop %v906
        %v908 = vmul.f32 %v677, 1.442695
        %v909 = vpow.pop %v908
        %v910 = vmul.f32 %v682, 1.442695
        %v911 = vpow.pop %v910
        %v912 = vmul.f32 %v687, 1.442695
        %v913 = vpow.pop %v912
        %v914 = vmul.f32 %v692, 1.442695
        %v915 = vpow.pop %v914
        %v916 = vmul.f32 %v697, 1.442695
        %v917 = vpow.pop %v916
        %v918 = vmul.f32 %v702, 1.442695
        %v919 = vpow.pop %v918
        %v920 = vmul.f32 %v707, 1.442695
        %v921 = vpow.pop %v920
        %v922 = vmul.f32 %v712, 1.442695
        %v923 = vpow.pop %v922
        %v924 = vmul.f32 %v717, 1.442695
        %v925 = vpow.pop %v924
        %v926 = vmul.f32 %v722, 1.442695
        %v927 = vpow.pop %v926
        %v928 = vmul.f32 %v727, 1.442695
        %v929 = vpow.pop %v928
        %v930 = vmul.f32 %v732, 1.442695
        %v931 = vpow.pop %v930
        %v932 = vmul.f32 %v737, 1.442695
        %v933 = vpow.pop %v932
        %v934 = vmul.f32 %v742, 1.442695
        %v935 = vpow.pop %v934
        %v936 = vmul.f32 %v747, 1.442695
        %v937 = vpow.pop %v936
        %v938 = vmul.f32 %v752, 1.442695
        %v939 = vpow.pop %v938
        %v940 = vmul.f32 %v757, 1.442695
        %v941 = vpow.pop %v940
        %v942 = vmul.f32 %v762, 1.442695
        %v943 = vpow.pop %v942
        %v944 = vmul.f32 %v767, 1.442695
        %v945 = vpow.pop %v944
        %v946 = vmul.f32 %v772, 1.442695
        %v947 = vpow.pop %v946
        %v948 = vmul.f32 %v777, 1.442695
        %v949 = vpow.pop %v948
        %v950 = vmul.f32 %v782, 1.442695
        %v951 = vpow.pop %v950
        %v952 = vmul.f32 %v787, 1.442695
        %v953 = vpow.pop %v952
        %v954 = vmul.f32 %v792, 1.442695
        %v955 = vpow.pop %v954
        %v956 = vmul.f32 %v797, 1.442695
        %v957 = vpow.pop %v956
        %v958 = vmul.f32 %v802, 1.442695
        %v959 = vpow.pop %v958
        %v960 = vmul.f32 %v807, 1.442695
        %v961 = vpow.pop %v960
        %v962 = vmul.f32 %v812, 1.442695
        %v963 = vpow.pop %v962
        %v964 = vmul.f32 %v817, 1.442695
        %v965 = vpow.pop %v964
        %v966 = vmul.f32 %v822, 1.442695
        %v967 = vpow.pop %v966
        %v968 = vmul.f32 %v827, 1.442695
        %v969 = vpow.pop %v968
        %v970 = vmul.f32 %v832, 1.442695
        %v971 = vpow.pop %v970
        %v972 = vmul.f32 %v837, 1.442695
        %v973 = vpow.pop %v972
        %v974 = vmul.f32 %v842, 1.442695
        %v975 = vpow.pop %v974
        %v976 = vsel %vm847, %v527, %v849
        %v977 = vsel %vm847, %v532, %v851
        %v978 = vsel %vm847, %v537, %v853
        %v979 = vsel %vm847, %v542, %v855
        %v980 = vsel %vm847, %v547, %v857
        %v981 = vsel %vm847, %v552, %v859
        %v982 = vsel %vm847, %v557, %v861
        %v983 = vsel %vm847, %v562, %v863
        %v984 = vsel %vm847, %v567, %v865
        %v985 = vsel %vm847, %v572, %v867
        %v986 = vsel %vm847, %v577, %v869
        %v987 = vsel %vm847, %v582, %v871
        %v988 = vsel %vm847, %v587, %v873
        %v989 = vsel %vm847, %v592, %v875
        %v990 = vsel %vm847, %v597, %v877
        %v991 = vsel %vm847, %v602, %v879
        %v992 = vsel %vm847, %v607, %v881
        %v993 = vsel %vm847, %v612, %v883
        %v994 = vsel %vm847, %v617, %v885
        %v995 = vsel %vm847, %v622, %v887
        %v996 = vsel %vm847, %v627, %v889
        %v997 = vsel %vm847, %v632, %v891
        %v998 = vsel %vm847, %v637, %v893
        %v999 = vsel %vm847, %v642, %v895
        %v1000 = vsel %vm847, %v647, %v897
        %v1001 = vsel %vm847, %v652, %v899
        %v1002 = vsel %vm847, %v657, %v901
        %v1003 = vsel %vm847, %v662, %v903
        %v1004 = vsel %vm847, %v667, %v905
        %v1005 = vsel %vm847, %v672, %v907
        %v1006 = vsel %vm847, %v677, %v909
        %v1007 = vsel %vm847, %v682, %v911
        %v1008 = vsel %vm847, %v687, %v913
        %v1009 = vsel %vm847, %v692, %v915
        %v1010 = vsel %vm847, %v697, %v917
        %v1011 = vsel %vm847, %v702, %v919
        %v1012 = vsel %vm847, %v707, %v921
        %v1013 = vsel %vm847, %v712, %v923
        %v1014 = vsel %vm847, %v717, %v925
        %v1015 = vsel %vm847, %v722, %v927
        %v1016 = vsel %vm847, %v727, %v929
        %v1017 = vsel %vm847, %v732, %v931
        %v1018 = vsel %vm847, %v737, %v933
        %v1019 = vsel %vm847, %v742, %v935
        %v1020 = vsel %vm847, %v747, %v937
        %v1021 = vsel %vm847, %v752, %v939
        %v1022 = vsel %vm847, %v757, %v941
        %v1023 = vsel %vm847, %v762, %v943
        %v1024 = vsel %vm847, %v767, %v945
        %v1025 = vsel %vm847, %v772, %v947
        %v1026 = vsel %vm847, %v777, %v949
        %v1027 = vsel %vm847, %v782, %v951
        %v1028 = vsel %vm847, %v787, %v953
        %v1029 = vsel %vm847, %v792, %v955
        %v1030 = vsel %vm847, %v797, %v957
        %v1031 = vsel %vm847, %v802, %v959
        %v1032 = vsel %vm847, %v807, %v961
        %v1033 = vsel %vm847, %v812, %v963
        %v1034 = vsel %vm847, %v817, %v965
        %v1035 = vsel %vm847, %v822, %v967
        %v1036 = vsel %vm847, %v827, %v969
        %v1037 = vsel %vm847, %v832, %v971
        %v1038 = vsel %vm847, %v837, %v973
        %v1039 = vsel %vm847, %v842, %v975
        %vm1040 = vcmask 15360
        %1041 = vst.msk [vmem:[%s172] sm:$0xff] %vm1040, %v976
        %1042 = vst.msk [vmem:[%s172 + $0x8] sm:$0xff] %vm1040, %v977
        %1043 = vst.msk [vmem:[%s172 + $0x10] sm:$0xff] %vm1040, %v978
        %1044 = vst.msk [vmem:[%s172 + $0x18] sm:$0xff] %vm1040, %v979
        %1045 = vst.msk [vmem:[%s172 + $0x20] sm:$0xff] %vm1040, %v980
        %1046 = vst.msk [vmem:[%s172 + $0x28] sm:$0xff] %vm1040, %v981
        %1047 = vst.msk [vmem:[%s172 + $0x30] sm:$0xff] %vm1040, %v982
        %1048 = vst.msk [vmem:[%s172 + $0x38] sm:$0xff] %vm1040, %v983
        %1049 = vst.msk [vmem:[%s172 + $0x40] sm:$0xff] %vm1040, %v984
        %1050 = vst.msk [vmem:[%s172 + $0x48] sm:$0xff] %vm1040, %v985
        %1051 = vst.msk [vmem:[%s172 + $0x50] sm:$0xff] %vm1040, %v986
        %1052 = vst.msk [vmem:[%s172 + $0x58] sm:$0xff] %vm1040, %v987
        %1053 = vst.msk [vmem:[%s172 + $0x60] sm:$0xff] %vm1040, %v988
        %1054 = vst.msk [vmem:[%s172 + $0x68] sm:$0xff] %vm1040, %v989
        %1055 = vst.msk [vmem:[%s172 + $0x70] sm:$0xff] %vm1040, %v990
        %1056 = vst.msk [vmem:[%s172 + $0x78] sm:$0xff] %vm1040, %v991
        %1057 = vst.msk [vmem:[%s172 + $0x80] sm:$0xff] %vm1040, %v992
        %1058 = vst.msk [vmem:[%s172 + $0x88] sm:$0xff] %vm1040, %v993
        %1059 = vst.msk [vmem:[%s172 + $0x90] sm:$0xff] %vm1040, %v994
        %1060 = vst.msk [vmem:[%s172 + $0x98] sm:$0xff] %vm1040, %v995
        %1061 = vst.msk [vmem:[%s172 + $0xa0] sm:$0xff] %vm1040, %v996
        %1062 = vst.msk [vmem:[%s172 + $0xa8] sm:$0xff] %vm1040, %v997
        %1063 = vst.msk [vmem:[%s172 + $0xb0] sm:$0xff] %vm1040, %v998
        %1064 = vst.msk [vmem:[%s172 + $0xb8] sm:$0xff] %vm1040, %v999
        %1065 = vst.msk [vmem:[%s172 + $0xc0] sm:$0xff] %vm1040, %v1000
        %1066 = vst.msk [vmem:[%s172 + $0xc8] sm:$0xff] %vm1040, %v1001
        %1067 = vst.msk [vmem:[%s172 + $0xd0] sm:$0xff] %vm1040, %v1002
        %1068 = vst.msk [vmem:[%s172 + $0xd8] sm:$0xff] %vm1040, %v1003
        %1069 = vst.msk [vmem:[%s172 + $0xe0] sm:$0xff] %vm1040, %v1004
        %1070 = vst.msk [vmem:[%s172 + $0xe8] sm:$0xff] %vm1040, %v1005
        %1071 = vst.msk [vmem:[%s172 + $0xf0] sm:$0xff] %vm1040, %v1006
        %1072 = vst.msk [vmem:[%s172 + $0xf8] sm:$0xff] %vm1040, %v1007
        %1073 = vst.msk [vmem:[%s172 + $0x100] sm:$0xff] %vm1040, %v1008
        %1074 = vst.msk [vmem:[%s172 + $0x108] sm:$0xff] %vm1040, %v1009
        %1075 = vst.msk [vmem:[%s172 + $0x110] sm:$0xff] %vm1040, %v1010
        %1076 = vst.msk [vmem:[%s172 + $0x118] sm:$0xff] %vm1040, %v1011
        %1077 = vst.msk [vmem:[%s172 + $0x120] sm:$0xff] %vm1040, %v1012
        %1078 = vst.msk [vmem:[%s172 + $0x128] sm:$0xff] %vm1040, %v1013
        %1079 = vst.msk [vmem:[%s172 + $0x130] sm:$0xff] %vm1040, %v1014
        %1080 = vst.msk [vmem:[%s172 + $0x138] sm:$0xff] %vm1040, %v1015
        %1081 = vst.msk [vmem:[%s172 + $0x140] sm:$0xff] %vm1040, %v1016
        %1082 = vst.msk [vmem:[%s172 + $0x148] sm:$0xff] %vm1040, %v1017
        %1083 = vst.msk [vmem:[%s172 + $0x150] sm:$0xff] %vm1040, %v1018
        %1084 = vst.msk [vmem:[%s172 + $0x158] sm:$0xff] %vm1040, %v1019
        %1085 = vst.msk [vmem:[%s172 + $0x160] sm:$0xff] %vm1040, %v1020
        %1086 = vst.msk [vmem:[%s172 + $0x168] sm:$0xff] %vm1040, %v1021
        %1087 = vst.msk [vmem:[%s172 + $0x170] sm:$0xff] %vm1040, %v1022
        %1088 = vst.msk [vmem:[%s172 + $0x178] sm:$0xff] %vm1040, %v1023
        %1089 = vst.msk [vmem:[%s172 + $0x180] sm:$0xff] %vm1040, %v1024
        %1090 = vst.msk [vmem:[%s172 + $0x188] sm:$0xff] %vm1040, %v1025
        %1091 = vst.msk [vmem:[%s172 + $0x190] sm:$0xff] %vm1040, %v1026
        %1092 = vst.msk [vmem:[%s172 + $0x198] sm:$0xff] %vm1040, %v1027
        %1093 = vst.msk [vmem:[%s172 + $0x1a0] sm:$0xff] %vm1040, %v1028
        %1094 = vst.msk [vmem:[%s172 + $0x1a8] sm:$0xff] %vm1040, %v1029
        %1095 = vst.msk [vmem:[%s172 + $0x1b0] sm:$0xff] %vm1040, %v1030
        %1096 = vst.msk [vmem:[%s172 + $0x1b8] sm:$0xff] %vm1040, %v1031
        %1097 = vst.msk [vmem:[%s172 + $0x1c0] sm:$0xff] %vm1040, %v1032
        %1098 = vst.msk [vmem:[%s172 + $0x1c8] sm:$0xff] %vm1040, %v1033
        %1099 = vst.msk [vmem:[%s172 + $0x1d0] sm:$0xff] %vm1040, %v1034
        %1100 = vst.msk [vmem:[%s172 + $0x1d8] sm:$0xff] %vm1040, %v1035
        %1101 = vst.msk [vmem:[%s172 + $0x1e0] sm:$0xff] %vm1040, %v1036
        %1102 = vst.msk [vmem:[%s172 + $0x1e8] sm:$0xff] %vm1040, %v1037
        %1103 = vst.msk [vmem:[%s172 + $0x1f0] sm:$0xff] %vm1040, %v1038
        %1104 = vst.msk [vmem:[%s172 + $0x1f8] sm:$0xff] %vm1040, %v1039
        %s1105 = sand.u32 %s90, 1
        %s1106 = sand.u32 %s90, 1
        %s1107 = smul.addr %s1106, 512
        %s1108 = scalar_lea.vmem [#allocation2], %s1107
        // Predicated region
        $region33: #{tpu_custom_call.1} parent=31 // pred_check
          %p1109 = pneg %p100
        $region34: #{tpu_custom_call.1} parent=31 // pred_check_branch
          %1111 = sbr.rel (%p1109) target = $region36
        $region35: #{tpu_custom_call.1} parent=31 // pred_region
          %s1112 = smul.u32 64, %s14
          %s1113 = ssub.s32 80, %s1112
          %p1114 = scmp.lt.s32.totalorder %s1113, 64
          %s1115 = scalar_select %p1114, %s1113, 64
          %s1116 = smul.u32 128, %s1115
          %p1117 = scmp.ne.s32.totalorder 0, %s1116
          %s1118 = smul.addr %s1112, 8
          %s1119 = scalar_lea.vmem %s3, %s1118
          // Predicated region
          $region37: #{tpu_custom_call.1} parent=35 // pred_check
            %p1120 = pneg %p1117
          $region38: #{tpu_custom_call.1} parent=35 // pred_check_branch
            %1122 = sbr.rel (%p1120) target = $region40
          $region39: #{tpu_custom_call.1} parent=35 // pred_region
            // Predicated region
            $region41: #{tpu_custom_call.1} parent=39 // pred_check
              _
            $region42: #{tpu_custom_call.1} parent=39 // pred_check_branch
              %1124 = sbr.rel (0) target = $region44
            $region43: #{tpu_custom_call.1} parent=39 // pred_region
              // Predicated region
              $region63: #{tpu_custom_call.1} parent=43 // pred_check
                _
              $region64: #{tpu_custom_call.1} parent=43 // pred_check_branch
                %1300 = sbr.rel (0) target = $region66
              $region65: #{tpu_custom_call.1} parent=43 // pred_region
                %s1301 = sshrl.u32 %s1115, 6
                // While loop
                $region67: #{tpu_custom_call.1} parent=65 // loop_pre_header
                  _
                $region68: #{tpu_custom_call.1} parent=65 // loop_header
                  %s1303 = sphi 0, %s1305
                  %p1304 = scmp.ge.s32.totalorder %s1303, %s1301
                  %s1308 = sphi 0, %s1441
                  %s1309 = sphi %s1108, %s1444
                  %s1310 = sphi %s1119, %s1445
                $region69: #{tpu_custom_call.1} parent=65 // loop_header_branch
                  %1307 = sbr.rel (%p1304) target = $region73
                $region70: #{tpu_custom_call.1} parent=65 // loop_body
                  %v1311 = vld [vmem:[%s1309] sm:$0xff]
                  %1312 = vst [vmem:[%s1310] sm:$0xff] %v1311
                  %v1313 = vld [vmem:[%s1309 + $0x8] sm:$0xff]
                  %1314 = vst [vmem:[%s1310 + $0x8] sm:$0xff] %v1313
                  %v1315 = vld [vmem:[%s1309 + $0x10] sm:$0xff]
                  %1316 = vst [vmem:[%s1310 + $0x10] sm:$0xff] %v1315
                  %v1317 = vld [vmem:[%s1309 + $0x18] sm:$0xff]
                  %1318 = vst [vmem:[%s1310 + $0x18] sm:$0xff] %v1317
                  %v1319 = vld [vmem:[%s1309 + $0x20] sm:$0xff]
                  %1320 = vst [vmem:[%s1310 + $0x20] sm:$0xff] %v1319
                  %v1321 = vld [vmem:[%s1309 + $0x28] sm:$0xff]
                  %1322 = vst [vmem:[%s1310 + $0x28] sm:$0xff] %v1321
                  %v1323 = vld [vmem:[%s1309 + $0x30] sm:$0xff]
                  %1324 = vst [vmem:[%s1310 + $0x30] sm:$0xff] %v1323
                  %v1325 = vld [vmem:[%s1309 + $0x38] sm:$0xff]
                  %1326 = vst [vmem:[%s1310 + $0x38] sm:$0xff] %v1325
                  %v1327 = vld [vmem:[%s1309 + $0x40] sm:$0xff]
                  %1328 = vst [vmem:[%s1310 + $0x40] sm:$0xff] %v1327
                  %v1329 = vld [vmem:[%s1309 + $0x48] sm:$0xff]
                  %1330 = vst [vmem:[%s1310 + $0x48] sm:$0xff] %v1329
                  %v1331 = vld [vmem:[%s1309 + $0x50] sm:$0xff]
                  %1332 = vst [vmem:[%s1310 + $0x50] sm:$0xff] %v1331
                  %v1333 = vld [vmem:[%s1309 + $0x58] sm:$0xff]
                  %1334 = vst [vmem:[%s1310 + $0x58] sm:$0xff] %v1333
                  %v1335 = vld [vmem:[%s1309 + $0x60] sm:$0xff]
                  %1336 = vst [vmem:[%s1310 + $0x60] sm:$0xff] %v1335
                  %v1337 = vld [vmem:[%s1309 + $0x68] sm:$0xff]
                  %1338 = vst [vmem:[%s1310 + $0x68] sm:$0xff] %v1337
                  %v1339 = vld [vmem:[%s1309 + $0x70] sm:$0xff]
                  %1340 = vst [vmem:[%s1310 + $0x70] sm:$0xff] %v1339
                  %v1341 = vld [vmem:[%s1309 + $0x78] sm:$0xff]
                  %1342 = vst [vmem:[%s1310 + $0x78] sm:$0xff] %v1341
                  %v1343 = vld [vmem:[%s1309 + $0x80] sm:$0xff]
                  %1344 = vst [vmem:[%s1310 + $0x80] sm:$0xff] %v1343
                  %v1345 = vld [vmem:[%s1309 + $0x88] sm:$0xff]
                  %1346 = vst [vmem:[%s1310 + $0x88] sm:$0xff] %v1345
                  %v1347 = vld [vmem:[%s1309 + $0x90] sm:$0xff]
                  %1348 = vst [vmem:[%s1310 + $0x90] sm:$0xff] %v1347
                  %v1349 = vld [vmem:[%s1309 + $0x98] sm:$0xff]
                  %1350 = vst [vmem:[%s1310 + $0x98] sm:$0xff] %v1349
                  %v1351 = vld [vmem:[%s1309 + $0xa0] sm:$0xff]
                  %1352 = vst [vmem:[%s1310 + $0xa0] sm:$0xff] %v1351
                  %v1353 = vld [vmem:[%s1309 + $0xa8] sm:$0xff]
                  %1354 = vst [vmem:[%s1310 + $0xa8] sm:$0xff] %v1353
                  %v1355 = vld [vmem:[%s1309 + $0xb0] sm:$0xff]
                  %1356 = vst [vmem:[%s1310 + $0xb0] sm:$0xff] %v1355
                  %v1357 = vld [vmem:[%s1309 + $0xb8] sm:$0xff]
                  %1358 = vst [vmem:[%s1310 + $0xb8] sm:$0xff] %v1357
                  %v1359 = vld [vmem:[%s1309 + $0xc0] sm:$0xff]
                  %1360 = vst [vmem:[%s1310 + $0xc0] sm:$0xff] %v1359
                  %v1361 = vld [vmem:[%s1309 + $0xc8] sm:$0xff]
                  %1362 = vst [vmem:[%s1310 + $0xc8] sm:$0xff] %v1361
                  %v1363 = vld [vmem:[%s1309 + $0xd0] sm:$0xff]
                  %1364 = vst [vmem:[%s1310 + $0xd0] sm:$0xff] %v1363
                  %v1365 = vld [vmem:[%s1309 + $0xd8] sm:$0xff]
                  %1366 = vst [vmem:[%s1310 + $0xd8] sm:$0xff] %v1365
                  %v1367 = vld [vmem:[%s1309 + $0xe0] sm:$0xff]
                  %1368 = vst [vmem:[%s1310 + $0xe0] sm:$0xff] %v1367
                  %v1369 = vld [vmem:[%s1309 + $0xe8] sm:$0xff]
                  %1370 = vst [vmem:[%s1310 + $0xe8] sm:$0xff] %v1369
                  %v1371 = vld [vmem:[%s1309 + $0xf0] sm:$0xff]
                  %1372 = vst [vmem:[%s1310 + $0xf0] sm:$0xff] %v1371
                  %v1373 = vld [vmem:[%s1309 + $0xf8] sm:$0xff]
                  %1374 = vst [vmem:[%s1310 + $0xf8] sm:$0xff] %v1373
                  %v1375 = vld [vmem:[%s1309 + $0x100] sm:$0xff]
                  %1376 = vst [vmem:[%s1310 + $0x100] sm:$0xff] %v1375
                  %v1377 = vld [vmem:[%s1309 + $0x108] sm:$0xff]
                  %1378 = vst [vmem:[%s1310 + $0x108] sm:$0xff] %v1377
                  %v1379 = vld [vmem:[%s1309 + $0x110] sm:$0xff]
                  %1380 = vst [vmem:[%s1310 + $0x110] sm:$0xff] %v1379
                  %v1381 = vld [vmem:[%s1309 + $0x118] sm:$0xff]
                  %1382 = vst [vmem:[%s1310 + $0x118] sm:$0xff] %v1381
                  %v1383 = vld [vmem:[%s1309 + $0x120] sm:$0xff]
                  %1384 = vst [vmem:[%s1310 + $0x120] sm:$0xff] %v1383
                  %v1385 = vld [vmem:[%s1309 + $0x128] sm:$0xff]
                  %1386 = vst [vmem:[%s1310 + $0x128] sm:$0xff] %v1385
                  %v1387 = vld [vmem:[%s1309 + $0x130] sm:$0xff]
                  %1388 = vst [vmem:[%s1310 + $0x130] sm:$0xff] %v1387
                  %v1389 = vld [vmem:[%s1309 + $0x138] sm:$0xff]
                  %1390 = vst [vmem:[%s1310 + $0x138] sm:$0xff] %v1389
                  %v1391 = vld [vmem:[%s1309 + $0x140] sm:$0xff]
                  %1392 = vst [vmem:[%s1310 + $0x140] sm:$0xff] %v1391
                  %v1393 = vld [vmem:[%s1309 + $0x148] sm:$0xff]
                  %1394 = vst [vmem:[%s1310 + $0x148] sm:$0xff] %v1393
                  %v1395 = vld [vmem:[%s1309 + $0x150] sm:$0xff]
                  %1396 = vst [vmem:[%s1310 + $0x150] sm:$0xff] %v1395
                  %v1397 = vld [vmem:[%s1309 + $0x158] sm:$0xff]
                  %1398 = vst [vmem:[%s1310 + $0x158] sm:$0xff] %v1397
                  %v1399 = vld [vmem:[%s1309 + $0x160] sm:$0xff]
                  %1400 = vst [vmem:[%s1310 + $0x160] sm:$0xff] %v1399
                  %v1401 = vld [vmem:[%s1309 + $0x168] sm:$0xff]
                  %1402 = vst [vmem:[%s1310 + $0x168] sm:$0xff] %v1401
                  %v1403 = vld [vmem:[%s1309 + $0x170] sm:$0xff]
                  %1404 = vst [vmem:[%s1310 + $0x170] sm:$0xff] %v1403
                  %v1405 = vld [vmem:[%s1309 + $0x178] sm:$0xff]
                  %1406 = vst [vmem:[%s1310 + $0x178] sm:$0xff] %v1405
                  %v1407 = vld [vmem:[%s1309 + $0x180] sm:$0xff]
                  %1408 = vst [vmem:[%s1310 + $0x180] sm:$0xff] %v1407
                  %v1409 = vld [vmem:[%s1309 + $0x188] sm:$0xff]
                  %1410 = vst [vmem:[%s1310 + $0x188] sm:$0xff] %v1409
                  %v1411 = vld [vmem:[%s1309 + $0x190] sm:$0xff]
                  %1412 = vst [vmem:[%s1310 + $0x190] sm:$0xff] %v1411
                  %v1413 = vld [vmem:[%s1309 + $0x198] sm:$0xff]
                  %1414 = vst [vmem:[%s1310 + $0x198] sm:$0xff] %v1413
                  %v1415 = vld [vmem:[%s1309 + $0x1a0] sm:$0xff]
                  %1416 = vst [vmem:[%s1310 + $0x1a0] sm:$0xff] %v1415
                  %v1417 = vld [vmem:[%s1309 + $0x1a8] sm:$0xff]
                  %1418 = vst [vmem:[%s1310 + $0x1a8] sm:$0xff] %v1417
                  %v1419 = vld [vmem:[%s1309 + $0x1b0] sm:$0xff]
                  %1420 = vst [vmem:[%s1310 + $0x1b0] sm:$0xff] %v1419
                  %v1421 = vld [vmem:[%s1309 + $0x1b8] sm:$0xff]
                  %1422 = vst [vmem:[%s1310 + $0x1b8] sm:$0xff] %v1421
                  %v1423 = vld [vmem:[%s1309 + $0x1c0] sm:$0xff]
                  %1424 = vst [vmem:[%s1310 + $0x1c0] sm:$0xff] %v1423
                  %v1425 = vld [vmem:[%s1309 + $0x1c8] sm:$0xff]
                  %1426 = vst [vmem:[%s1310 + $0x1c8] sm:$0xff] %v1425
                  %v1427 = vld [vmem:[%s1309 + $0x1d0] sm:$0xff]
                  %1428 = vst [vmem:[%s1310 + $0x1d0] sm:$0xff] %v1427
                  %v1429 = vld [vmem:[%s1309 + $0x1d8] sm:$0xff]
                  %1430 = vst [vmem:[%s1310 + $0x1d8] sm:$0xff] %v1429
                  %v1431 = vld [vmem:[%s1309 + $0x1e0] sm:$0xff]
                  %1432 = vst [vmem:[%s1310 + $0x1e0] sm:$0xff] %v1431
                  %v1433 = vld [vmem:[%s1309 + $0x1e8] sm:$0xff]
                  %1434 = vst [vmem:[%s1310 + $0x1e8] sm:$0xff] %v1433
                  %v1435 = vld [vmem:[%s1309 + $0x1f0] sm:$0xff]
                  %1436 = vst [vmem:[%s1310 + $0x1f0] sm:$0xff] %v1435
                  %v1437 = vld [vmem:[%s1309 + $0x1f8] sm:$0xff]
                  %1438 = vst [vmem:[%s1310 + $0x1f8] sm:$0xff] %v1437
                  %s1439 = sadd.s32 1, %s1308
                  %p1440 = scmp.ge.s32.totalorder %s1439, %s1301
                  %s1441 = scalar_select %p1440, 0, %s1439
                  %s1442 = smul.u32 %s1441, 512
                  %s1443 = smul.u32 %s1441, 512
                  %s1444 = scalar_lea.vmem %s1108, %s1442 [#allocation2]
                  %s1445 = scalar_lea.vmem %s1119, %s1443
                $region71: #{tpu_custom_call.1} parent=65 // loop_footer
                  %s1305 = sadd.s32 %s1303, 1
                $region72: #{tpu_custom_call.1} parent=65 // loop_footer_branch
                  %1302 = sbr.rel target = $region68
                $region73: #{tpu_custom_call.1} parent=65 // loop_exit
                  _
                %s1446 = sshrl.u32 %s1115, 6
                %s1447 = sand.u32 %s1115, 63
                %s1448 = smul.u32 %s1446, 64
                %s1449 = smul.u32 8, %s1448
                %s1450 = scalar_lea.vmem %s1108, %s1449 [#allocation2]
                %s1451 = smul.u32 8, %s1448
                %s1452 = scalar_lea.vmem %s1119, %s1451
                // While loop
                $region74: #{tpu_custom_call.1} parent=65 // loop_pre_header
                  _
                $region75: #{tpu_custom_call.1} parent=65 // loop_header
                  %s1454 = sphi 0, %s1456
                  %p1455 = scmp.ge.s32.totalorder %s1454, %s1447
                  %s1459 = sphi 0, %s1466
                  %s1460 = sphi %s1450, %s1469
                  %s1461 = sphi %s1452, %s1470
                $region76: #{tpu_custom_call.1} parent=65 // loop_header_branch
                  %1458 = sbr.rel (%p1455) target = $region80
                $region77: #{tpu_custom_call.1} parent=65 // loop_body
                  %v1462 = vld [vmem:[%s1460] sm:$0xff]
                  %1463 = vst [vmem:[%s1461] sm:$0xff] %v1462
                  %s1464 = sadd.s32 1, %s1459
                  %p1465 = scmp.ge.s32.totalorder %s1464, %s1447
                  %s1466 = scalar_select %p1465, 0, %s1464
                  %s1467 = smul.u32 %s1466, 8
                  %s1468 = smul.u32 %s1466, 8
                  %s1469 = scalar_lea.vmem %s1450, %s1467 [#allocation2]
                  %s1470 = scalar_lea.vmem %s1452, %s1468
                $region78: #{tpu_custom_call.1} parent=65 // loop_footer
                  %s1456 = sadd.s32 %s1454, 1
                $region79: #{tpu_custom_call.1} parent=65 // loop_footer_branch
                  %1453 = sbr.rel target = $region75
                $region80: #{tpu_custom_call.1} parent=65 // loop_exit
                  _
              $region66: #{tpu_custom_call.1} parent=43 // pred_fallthru
                _
              // Predicated region
              $region81: #{tpu_custom_call.1} parent=43 // pred_check
                _
              $region82: #{tpu_custom_call.1} parent=43 // pred_check_branch
                %1472 = sbr.rel target = $region84
              $region83: #{tpu_custom_call.1} parent=43 // pred_region
                _
              $region84: #{tpu_custom_call.1} parent=43 // pred_fallthru
                _
            $region44: #{tpu_custom_call.1} parent=39 // pred_fallthru
              _
            // Predicated region
            $region45: #{tpu_custom_call.1} parent=39 // pred_check
              _
            $region46: #{tpu_custom_call.1} parent=39 // pred_check_branch
              %1126 = sbr.rel target = $region48
            $region47: #{tpu_custom_call.1} parent=39 // pred_region
              %s1128 = ssub.s32 256, 1
              %s1129 = sshrl.u32 %s1115, 6
              // While loop
              $region49: #{tpu_custom_call.1} parent=47 // loop_pre_header
                _
              $region50: #{tpu_custom_call.1} parent=47 // loop_header
                %s1131 = sphi 0, %s1133
                %p1132 = scmp.ge.s32.totalorder %s1131, %s1129
                %s1136 = sphi 0, %s1269
                %s1137 = sphi %s1108, %s1272
                %s1138 = sphi %s1119, %s1273
              $region51: #{tpu_custom_call.1} parent=47 // loop_header_branch
                %1135 = sbr.rel (%p1132) target = $region55
              $region52: #{tpu_custom_call.1} parent=47 // loop_body
                %v1139 = vld [vmem:[%s1137] sm:%s1128]
                %1140 = vst [vmem:[%s1138] sm:%s1128] %v1139
                %v1141 = vld [vmem:[%s1137 + $0x8] sm:%s1128]
                %1142 = vst [vmem:[%s1138 + $0x8] sm:%s1128] %v1141
                %v1143 = vld [vmem:[%s1137 + $0x10] sm:%s1128]
                %1144 = vst [vmem:[%s1138 + $0x10] sm:%s1128] %v1143
                %v1145 = vld [vmem:[%s1137 + $0x18] sm:%s1128]
                %1146 = vst [vmem:[%s1138 + $0x18] sm:%s1128] %v1145
                %v1147 = vld [vmem:[%s1137 + $0x20] sm:%s1128]
                %1148 = vst [vmem:[%s1138 + $0x20] sm:%s1128] %v1147
                %v1149 = vld [vmem:[%s1137 + $0x28] sm:%s1128]
                %1150 = vst [vmem:[%s1138 + $0x28] sm:%s1128] %v1149
                %v1151 = vld [vmem:[%s1137 + $0x30] sm:%s1128]
                %1152 = vst [vmem:[%s1138 + $0x30] sm:%s1128] %v1151
                %v1153 = vld [vmem:[%s1137 + $0x38] sm:%s1128]
                %1154 = vst [vmem:[%s1138 + $0x38] sm:%s1128] %v1153
                %v1155 = vld [vmem:[%s1137 + $0x40] sm:%s1128]
                %1156 = vst [vmem:[%s1138 + $0x40] sm:%s1128] %v1155
                %v1157 = vld [vmem:[%s1137 + $0x48] sm:%s1128]
                %1158 = vst [vmem:[%s1138 + $0x48] sm:%s1128] %v1157
                %v1159 = vld [vmem:[%s1137 + $0x50] sm:%s1128]
                %1160 = vst [vmem:[%s1138 + $0x50] sm:%s1128] %v1159
                %v1161 = vld [vmem:[%s1137 + $0x58] sm:%s1128]
                %1162 = vst [vmem:[%s1138 + $0x58] sm:%s1128] %v1161
                %v1163 = vld [vmem:[%s1137 + $0x60] sm:%s1128]
                %1164 = vst [vmem:[%s1138 + $0x60] sm:%s1128] %v1163
                %v1165 = vld [vmem:[%s1137 + $0x68] sm:%s1128]
                %1166 = vst [vmem:[%s1138 + $0x68] sm:%s1128] %v1165
                %v1167 = vld [vmem:[%s1137 + $0x70] sm:%s1128]
                %1168 = vst [vmem:[%s1138 + $0x70] sm:%s1128] %v1167
                %v1169 = vld [vmem:[%s1137 + $0x78] sm:%s1128]
                %1170 = vst [vmem:[%s1138 + $0x78] sm:%s1128] %v1169
                %v1171 = vld [vmem:[%s1137 + $0x80] sm:%s1128]
                %1172 = vst [vmem:[%s1138 + $0x80] sm:%s1128] %v1171
                %v1173 = vld [vmem:[%s1137 + $0x88] sm:%s1128]
                %1174 = vst [vmem:[%s1138 + $0x88] sm:%s1128] %v1173
                %v1175 = vld [vmem:[%s1137 + $0x90] sm:%s1128]
                %1176 = vst [vmem:[%s1138 + $0x90] sm:%s1128] %v1175
                %v1177 = vld [vmem:[%s1137 + $0x98] sm:%s1128]
                %1178 = vst [vmem:[%s1138 + $0x98] sm:%s1128] %v1177
                %v1179 = vld [vmem:[%s1137 + $0xa0] sm:%s1128]
                %1180 = vst [vmem:[%s1138 + $0xa0] sm:%s1128] %v1179
                %v1181 = vld [vmem:[%s1137 + $0xa8] sm:%s1128]
                %1182 = vst [vmem:[%s1138 + $0xa8] sm:%s1128] %v1181
                %v1183 = vld [vmem:[%s1137 + $0xb0] sm:%s1128]
                %1184 = vst [vmem:[%s1138 + $0xb0] sm:%s1128] %v1183
                %v1185 = vld [vmem:[%s1137 + $0xb8] sm:%s1128]
                %1186 = vst [vmem:[%s1138 + $0xb8] sm:%s1128] %v1185
                %v1187 = vld [vmem:[%s1137 + $0xc0] sm:%s1128]
                %1188 = vst [vmem:[%s1138 + $0xc0] sm:%s1128] %v1187
                %v1189 = vld [vmem:[%s1137 + $0xc8] sm:%s1128]
                %1190 = vst [vmem:[%s1138 + $0xc8] sm:%s1128] %v1189
                %v1191 = vld [vmem:[%s1137 + $0xd0] sm:%s1128]
                %1192 = vst [vmem:[%s1138 + $0xd0] sm:%s1128] %v1191
                %v1193 = vld [vmem:[%s1137 + $0xd8] sm:%s1128]
                %1194 = vst [vmem:[%s1138 + $0xd8] sm:%s1128] %v1193
                %v1195 = vld [vmem:[%s1137 + $0xe0] sm:%s1128]
                %1196 = vst [vmem:[%s1138 + $0xe0] sm:%s1128] %v1195
                %v1197 = vld [vmem:[%s1137 + $0xe8] sm:%s1128]
                %1198 = vst [vmem:[%s1138 + $0xe8] sm:%s1128] %v1197
                %v1199 = vld [vmem:[%s1137 + $0xf0] sm:%s1128]
                %1200 = vst [vmem:[%s1138 + $0xf0] sm:%s1128] %v1199
                %v1201 = vld [vmem:[%s1137 + $0xf8] sm:%s1128]
                %1202 = vst [vmem:[%s1138 + $0xf8] sm:%s1128] %v1201
                %v1203 = vld [vmem:[%s1137 + $0x100] sm:%s1128]
                %1204 = vst [vmem:[%s1138 + $0x100] sm:%s1128] %v1203
                %v1205 = vld [vmem:[%s1137 + $0x108] sm:%s1128]
                %1206 = vst [vmem:[%s1138 + $0x108] sm:%s1128] %v1205
                %v1207 = vld [vmem:[%s1137 + $0x110] sm:%s1128]
                %1208 = vst [vmem:[%s1138 + $0x110] sm:%s1128] %v1207
                %v1209 = vld [vmem:[%s1137 + $0x118] sm:%s1128]
                %1210 = vst [vmem:[%s1138 + $0x118] sm:%s1128] %v1209
                %v1211 = vld [vmem:[%s1137 + $0x120] sm:%s1128]
                %1212 = vst [vmem:[%s1138 + $0x120] sm:%s1128] %v1211
                %v1213 = vld [vmem:[%s1137 + $0x128] sm:%s1128]
                %1214 = vst [vmem:[%s1138 + $0x128] sm:%s1128] %v1213
                %v1215 = vld [vmem:[%s1137 + $0x130] sm:%s1128]
                %1216 = vst [vmem:[%s1138 + $0x130] sm:%s1128] %v1215
                %v1217 = vld [vmem:[%s1137 + $0x138] sm:%s1128]
                %1218 = vst [vmem:[%s1138 + $0x138] sm:%s1128] %v1217
                %v1219 = vld [vmem:[%s1137 + $0x140] sm:%s1128]
                %1220 = vst [vmem:[%s1138 + $0x140] sm:%s1128] %v1219
                %v1221 = vld [vmem:[%s1137 + $0x148] sm:%s1128]
                %1222 = vst [vmem:[%s1138 + $0x148] sm:%s1128] %v1221
                %v1223 = vld [vmem:[%s1137 + $0x150] sm:%s1128]
                %1224 = vst [vmem:[%s1138 + $0x150] sm:%s1128] %v1223
                %v1225 = vld [vmem:[%s1137 + $0x158] sm:%s1128]
                %1226 = vst [vmem:[%s1138 + $0x158] sm:%s1128] %v1225
                %v1227 = vld [vmem:[%s1137 + $0x160] sm:%s1128]
                %1228 = vst [vmem:[%s1138 + $0x160] sm:%s1128] %v1227
                %v1229 = vld [vmem:[%s1137 + $0x168] sm:%s1128]
                %1230 = vst [vmem:[%s1138 + $0x168] sm:%s1128] %v1229
                %v1231 = vld [vmem:[%s1137 + $0x170] sm:%s1128]
                %1232 = vst [vmem:[%s1138 + $0x170] sm:%s1128] %v1231
                %v1233 = vld [vmem:[%s1137 + $0x178] sm:%s1128]
                %1234 = vst [vmem:[%s1138 + $0x178] sm:%s1128] %v1233
                %v1235 = vld [vmem:[%s1137 + $0x180] sm:%s1128]
                %1236 = vst [vmem:[%s1138 + $0x180] sm:%s1128] %v1235
                %v1237 = vld [vmem:[%s1137 + $0x188] sm:%s1128]
                %1238 = vst [vmem:[%s1138 + $0x188] sm:%s1128] %v1237
                %v1239 = vld [vmem:[%s1137 + $0x190] sm:%s1128]
                %1240 = vst [vmem:[%s1138 + $0x190] sm:%s1128] %v1239
                %v1241 = vld [vmem:[%s1137 + $0x198] sm:%s1128]
                %1242 = vst [vmem:[%s1138 + $0x198] sm:%s1128] %v1241
                %v1243 = vld [vmem:[%s1137 + $0x1a0] sm:%s1128]
                %1244 = vst [vmem:[%s1138 + $0x1a0] sm:%s1128] %v1243
                %v1245 = vld [vmem:[%s1137 + $0x1a8] sm:%s1128]
                %1246 = vst [vmem:[%s1138 + $0x1a8] sm:%s1128] %v1245
                %v1247 = vld [vmem:[%s1137 + $0x1b0] sm:%s1128]
                %1248 = vst [vmem:[%s1138 + $0x1b0] sm:%s1128] %v1247
                %v1249 = vld [vmem:[%s1137 + $0x1b8] sm:%s1128]
                %1250 = vst [vmem:[%s1138 + $0x1b8] sm:%s1128] %v1249
                %v1251 = vld [vmem:[%s1137 + $0x1c0] sm:%s1128]
                %1252 = vst [vmem:[%s1138 + $0x1c0] sm:%s1128] %v1251
                %v1253 = vld [vmem:[%s1137 + $0x1c8] sm:%s1128]
                %1254 = vst [vmem:[%s1138 + $0x1c8] sm:%s1128] %v1253
                %v1255 = vld [vmem:[%s1137 + $0x1d0] sm:%s1128]
                %1256 = vst [vmem:[%s1138 + $0x1d0] sm:%s1128] %v1255
                %v1257 = vld [vmem:[%s1137 + $0x1d8] sm:%s1128]
                %1258 = vst [vmem:[%s1138 + $0x1d8] sm:%s1128] %v1257
                %v1259 = vld [vmem:[%s1137 + $0x1e0] sm:%s1128]
                %1260 = vst [vmem:[%s1138 + $0x1e0] sm:%s1128] %v1259
                %v1261 = vld [vmem:[%s1137 + $0x1e8] sm:%s1128]
                %1262 = vst [vmem:[%s1138 + $0x1e8] sm:%s1128] %v1261
                %v1263 = vld [vmem:[%s1137 + $0x1f0] sm:%s1128]
                %1264 = vst [vmem:[%s1138 + $0x1f0] sm:%s1128] %v1263
                %v1265 = vld [vmem:[%s1137 + $0x1f8] sm:%s1128]
                %1266 = vst [vmem:[%s1138 + $0x1f8] sm:%s1128] %v1265
                %s1267 = sadd.s32 1, %s1136
                %p1268 = scmp.ge.s32.totalorder %s1267, %s1129
                %s1269 = scalar_select %p1268, 0, %s1267
                %s1270 = smul.u32 %s1269, 512
                %s1271 = smul.u32 %s1269, 512
                %s1272 = scalar_lea.vmem %s1108, %s1270 [#allocation2]
                %s1273 = scalar_lea.vmem %s1119, %s1271
              $region53: #{tpu_custom_call.1} parent=47 // loop_footer
                %s1133 = sadd.s32 %s1131, 1
              $region54: #{tpu_custom_call.1} parent=47 // loop_footer_branch
                %1130 = sbr.rel target = $region50
              $region55: #{tpu_custom_call.1} parent=47 // loop_exit
                _
              %s1274 = sshrl.u32 %s1115, 6
              %s1275 = sand.u32 %s1115, 63
              %s1276 = smul.u32 %s1274, 64
              %s1277 = smul.u32 8, %s1276
              %s1278 = scalar_lea.vmem %s1108, %s1277 [#allocation2]
              %s1279 = smul.u32 8, %s1276
              %s1280 = scalar_lea.vmem %s1119, %s1279
              // While loop
              $region56: #{tpu_custom_call.1} parent=47 // loop_pre_header
                _
              $region57: #{tpu_custom_call.1} parent=47 // loop_header
                %s1282 = sphi 0, %s1284
                %p1283 = scmp.ge.s32.totalorder %s1282, %s1275
                %s1287 = sphi 0, %s1294
                %s1288 = sphi %s1278, %s1297
                %s1289 = sphi %s1280, %s1298
              $region58: #{tpu_custom_call.1} parent=47 // loop_header_branch
                %1286 = sbr.rel (%p1283) target = $region62
              $region59: #{tpu_custom_call.1} parent=47 // loop_body
                %v1290 = vld [vmem:[%s1288] sm:%s1128]
                %1291 = vst [vmem:[%s1289] sm:%s1128] %v1290
                %s1292 = sadd.s32 1, %s1287
                %p1293 = scmp.ge.s32.totalorder %s1292, %s1275
                %s1294 = scalar_select %p1293, 0, %s1292
                %s1295 = smul.u32 %s1294, 8
                %s1296 = smul.u32 %s1294, 8
                %s1297 = scalar_lea.vmem %s1278, %s1295 [#allocation2]
                %s1298 = scalar_lea.vmem %s1280, %s1296
              $region60: #{tpu_custom_call.1} parent=47 // loop_footer
                %s1284 = sadd.s32 %s1282, 1
              $region61: #{tpu_custom_call.1} parent=47 // loop_footer_branch
                %1281 = sbr.rel target = $region57
              $region62: #{tpu_custom_call.1} parent=47 // loop_exit
                _
            $region48: #{tpu_custom_call.1} parent=39 // pred_fallthru
              _
          $region40: #{tpu_custom_call.1} parent=35 // pred_fallthru
            _
          %1473 = vnop
        $region36: #{tpu_custom_call.1} parent=31 // pred_fallthru
          _
      $region32: #{tpu_custom_call.1} parent=5 // pred_fallthru
        _
      %p1474 = scmp.le.s32.totalorder 2, %s9
      // Predicated region
      $region85: #{tpu_custom_call.1} parent=5 // pred_check
        %p1475 = pneg %p1474
      $region86: #{tpu_custom_call.1} parent=5 // pred_check_branch
        %1477 = sbr.rel (%p1475) target = $region88
      $region87: #{tpu_custom_call.1} parent=5 // pred_region
        %s1478 = ssub.s32 %s9, 2
        // Predicated region
        $region89: #{tpu_custom_call.1} parent=87 // pred_check
          %p1479 = pneg %p106
        $region90: #{tpu_custom_call.1} parent=87 // pred_check_branch
          %1481 = sbr.rel (%p1479) target = $region92
        $region91: #{tpu_custom_call.1} parent=87 // pred_region
          %s1482 = sand.u32 %s91, 1
          %s1483 = sand.u32 %s91, 1
          %s1484 = smul.addr %s1483, 512
          %s1485 = scalar_lea.vmem [#allocation2], %s1484
        $region92: #{tpu_custom_call.1} parent=87 // pred_fallthru
          _
      $region88: #{tpu_custom_call.1} parent=5 // pred_fallthru
        _
    $region6: #{tpu_custom_call.1} parent=1 // loop_footer
      %s13 = sadd.s32 1, %s9
    $region7: #{tpu_custom_call.1} parent=1 // loop_footer_branch
      %8 = sbr.rel target = $region3
    $region8: #{tpu_custom_call.1} parent=1 // loop_exit
      _

</llo_original>
